<compile_context>
chip_gen: v7x
topology: tpu7x:2x2x1
jax: 0.10.0
libtpu: 0.0.40
codegen_flags: <defaults>
</compile_context>

<pallas_src>
import jax
import jax.numpy as jnp
from jax.experimental import pallas as pl
from jax.experimental.pallas import tpu as pltpu


# ---------------------------------------------------------------------------
# Fused kernel: down1 (3->32) -> down2 (32->64) -> down3 (64->128), all k=s=2
# ---------------------------------------------------------------------------
def _fused_down3_kernel(a0_ref, w1_ref, b1_ref, w2_ref, b2_ref, w3_ref, b3_ref,
                        out_ref, a2_sc):
    w1 = w1_ref[...]            # (128, 48) bf16, block-diag: 4 copies of W1
    w2 = w2_ref[...]            # (64, 128)  bf16
    w3 = w3_ref[...]            # (128, 256) bf16
    b1 = b1_ref[...]            # (128, 1) f32 (b1 stacked 4x)
    b2 = b2_ref[...]            # (64, 1)  f32
    b3 = b3_ref[...]            # (128, 1) f32

    # ---- down1 + down2, fused per level-2 parent (4 parents per 8x8 block) --
    for q2 in range(4):
        # down1: block-diagonal conv over the parent's 4 children, K=48.
        h1 = jnp.dot(w1, a0_ref[0, q2, :, :],
                     preferred_element_type=jnp.float32)          # (128, tm)
        h1 = jnp.maximum(h1 + b1, 0.0).astype(jnp.bfloat16)
        # down2: rows of h1 are already ordered as (tap r1)*32 + channel.
        h2 = jnp.dot(w2, h1, preferred_element_type=jnp.float32)  # (64, tm)
        h2 = jnp.maximum(h2 + b2, 0.0).astype(jnp.bfloat16)
        a2_sc[q2 * 64:(q2 + 1) * 64, :] = h2                      # slab q2

    # ---- down3: one K=256 matmul over the 4 stacked parent slabs ------------
    h3 = jnp.dot(w3, a2_sc[...], preferred_element_type=jnp.float32)
    out_ref[0, :, :] = jnp.maximum(h3 + b3, 0.0)                  # (128, tm) f32


def _pick_tile(m_pad: int, n: int) -> int:
    """Pixel-tile size along the lane axis (m_pad is a multiple of 128)."""
    for tm in (4096, 2048, 1024, 512, 256, 128):
        if m_pad % tm == 0:
            # keep >= 2 grid steps so 2-TC chips (v7x) can use both cores
            if n == 1 and m_pad == tm and tm > 128:
                continue
            return tm
    return 128


# ---------------------------------------------------------------------------
# Forward pass
# ---------------------------------------------------------------------------
@jax.jit
def vhrdownnet5_forward(params, x):
    """x: (N, 3, H, W) float32 with H, W multiples of 8 -> (N, 128, H//8, W//8)."""
    n, c, hh, ww = x.shape
    assert c == 3 and hh % 8 == 0 and ww % 8 == 0
    oh, ow = hh // 8, ww // 8
    m = oh * ow

    # Morton space-to-depth of the input, in bf16 (single boundary permutation):
    #   a0[n, q2, r1*12 + r*3 + ci, p] = x[n, ci, h3*8 + y2*4 + y1*2 + y0,
    #                                             w3*8 + x2*4 + x1*2 + x0]
    #   q2 = y2*2 + x2   (level-2 parent inside the 8x8 block)
    #   r1 = y1*2 + x1   (child / down2 tap),  r = y0*2 + x0 (down1 tap)
    #   p  = h3*ow + w3  (final output pixel, row-major)
    a0 = x.astype(jnp.bfloat16).reshape(n, 3, oh, 2, 2, 2, ow, 2, 2, 2)
    a0 = jnp.transpose(a0, (0, 3, 7, 4, 8, 5, 9, 1, 2, 6))
    a0 = a0.reshape(n, 4, 48, m)

    # Pad the pixel axis to a multiple of 128 so every store is lane-dense.
    m_pad = ((m + 127) // 128) * 128
    if m_pad != m:
        a0 = jnp.pad(a0, ((0, 0), (0, 0), (0, 0), (0, m_pad - m)))
    tm = _pick_tile(m_pad, n)

    (w1, b1), (w2, b2), (w3, b3) = params["down1"], params["down2"], params["down3"]
    # PyTorch OIHW (Cout, Cin, 2, 2) -> (Cout, (ki*2+kj)*Cin + ci)
    w1c = jnp.transpose(w1, (0, 2, 3, 1)).reshape(32, 12).astype(jnp.float32)
    w1_blk = jnp.kron(jnp.eye(4, dtype=jnp.float32), w1c).astype(jnp.bfloat16)  # (128,48)
    w2c = jnp.transpose(w2, (0, 2, 3, 1)).reshape(64, 128).astype(jnp.bfloat16)
    w3c = jnp.transpose(w3, (0, 2, 3, 1)).reshape(128, 256).astype(jnp.bfloat16)
    b1c = jnp.tile(b1.astype(jnp.float32), 4).reshape(128, 1)
    b2c = b2.reshape(64, 1).astype(jnp.float32)
    b3c = b3.reshape(128, 1).astype(jnp.float32)

    out = pl.pallas_call(
        _fused_down3_kernel,
        out_shape=jax.ShapeDtypeStruct((n, 128, m_pad), jnp.float32),
        grid=(n, m_pad // tm),
        in_specs=[
            pl.BlockSpec((1, 4, 48, tm), lambda i, t: (i, 0, 0, t)),  # input patches
            pl.BlockSpec((128, 48), lambda i, t: (0, 0)),             # W1 block-diag
            pl.BlockSpec((128, 1), lambda i, t: (0, 0)),              # b1 (stacked)
            pl.BlockSpec((64, 128), lambda i, t: (0, 0)),             # W2
            pl.BlockSpec((64, 1), lambda i, t: (0, 0)),               # b2
            pl.BlockSpec((128, 256), lambda i, t: (0, 0)),            # W3
            pl.BlockSpec((128, 1), lambda i, t: (0, 0)),              # b3
        ],
        out_specs=pl.BlockSpec((1, 128, tm), lambda i, t: (i, 0, t)),
        scratch_shapes=[
            pltpu.VMEM((256, tm), jnp.bfloat16),     # down2 activations (grouped)
        ],
        compiler_params=pltpu.CompilerParams(
            dimension_semantics=("parallel", "parallel"),
            vmem_limit_bytes=48 * 1024 * 1024),
    )(a0, w1_blk, b1c, w2c, b2c, w3c, b3c)

    out = out[:, :, :m]                  # drop lane padding
    return out.reshape(n, 128, oh, ow)   # free row-major reshape back to NCHW


# ---------------------------------------------------------------------------
# Parameters (deterministic, PyTorch-default-like uniform init) + reference
# ---------------------------------------------------------------------------
def _make_down_params(key, cin, cout, k=2):
    bound = 1.0 / (cin * k * k) ** 0.5
    kw, kb = jax.random.split(key)
    weight = jax.random.uniform(kw, (cout, cin, k, k), jnp.float32, -bound, bound)
    bias = jax.random.uniform(kb, (cout,), jnp.float32, -bound, bound)
    return weight, bias


def init_vhrdownnet5_params(key):
    k1, k2, k3 = jax.random.split(key, 3)
    return {
        "down1": _make_down_params(k1, 3, 32),
        "down2": _make_down_params(k2, 32, 64),
        "down3": _make_down_params(k3, 64, 128),
    }


def _reference_forward(params, x):
    """Pure-XLA f32 reference: Conv2d(k=2, s=2) + ReLU, three times."""
    def down(h, w, b):
        y = jax.lax.conv_general_dilated(
            h, w, window_strides=(2, 2), padding="VALID",
            dimension_numbers=("NCHW", "OIHW", "NCHW"),
            precision=jax.lax.Precision.HIGHEST)
        return jnp.maximum(y + b.reshape(1, -1, 1, 1), 0.0)
    h = down(x, *params["down1"])
    h = down(h, *params["down2"])
    h = down(h, *params["down3"])
    return h


if __name__ == "__main__":
    key = jax.random.PRNGKey(0)
    k_params, k_x = jax.random.split(key)

    params = init_vhrdownnet5_params(k_params)
    x = jax.random.normal(k_x, (2, 3, 32, 32), jnp.float32)   # VHR RGB input

    out = vhrdownnet5_forward(params, x)
    out = jax.block_until_ready(out)

    assert out.shape == (2, 128, 4, 4), out.shape
    assert bool(jnp.all(jnp.isfinite(out)))

    ref = _reference_forward(params, x)
    max_err = float(jnp.max(jnp.abs(out - ref)))
    # bf16 matmul operands (f32 accumulation) vs f32 conv reference
    assert max_err < 3e-2, f"max abs err vs conv reference: {max_err}"

    print("KERNEL_OK")
</pallas_src>

<mosaic_0001>
module attributes {stable_mosaic.version = 11 : i64} {
  func.func @_fused_down3_kernel(%arg0: i32, %arg1: i32, %arg2: memref<1x4x48x128xbf16, #tpu.memory_space<vmem>>, %arg3: memref<128x48xbf16, #tpu.memory_space<vmem>>, %arg4: memref<128x1xf32, #tpu.memory_space<vmem>>, %arg5: memref<64x128xbf16, #tpu.memory_space<vmem>>, %arg6: memref<64x1xf32, #tpu.memory_space<vmem>>, %arg7: memref<128x256xbf16, #tpu.memory_space<vmem>>, %arg8: memref<128x1xf32, #tpu.memory_space<vmem>>, %arg9: memref<1x128x128xf32, #tpu.memory_space<vmem>>, %arg10: memref<256x128xbf16, #tpu.memory_space<vmem>>) attributes {dimension_semantics = [#tpu.dimension_semantics<parallel>, #tpu.dimension_semantics<parallel>], iteration_bounds = array<i64: 2, 1>, scalar_prefetch = 0 : i64, scratch_operands = 1 : i64, tpu.core_type = #tpu.core_type<tc>, window_params = [{transform_indices = @transform_0, window_bounds = array<i64: 1, 4, 48, 128>}, {pipeline_mode = #tpu.pipeline_mode<synchronous>, transform_indices = @transform_1, window_bounds = array<i64: 128, 48>}, {pipeline_mode = #tpu.pipeline_mode<synchronous>, transform_indices = @transform_2, window_bounds = array<i64: 128, 1>}, {pipeline_mode = #tpu.pipeline_mode<synchronous>, transform_indices = @transform_3, window_bounds = array<i64: 64, 128>}, {pipeline_mode = #tpu.pipeline_mode<synchronous>, transform_indices = @transform_4, window_bounds = array<i64: 64, 1>}, {pipeline_mode = #tpu.pipeline_mode<synchronous>, transform_indices = @transform_5, window_bounds = array<i64: 128, 256>}, {pipeline_mode = #tpu.pipeline_mode<synchronous>, transform_indices = @transform_6, window_bounds = array<i64: 128, 1>}, {transform_indices = @transform_7, window_bounds = array<i64: 1, 128, 128>}]} {
    %c0 = arith.constant 0 : index
    %c0_0 = arith.constant 0 : index
    %0 = vector.load %arg3[%c0, %c0_0] : memref<128x48xbf16, #tpu.memory_space<vmem>>, vector<128x48xbf16>
    %c0_1 = arith.constant 0 : index
    %c0_2 = arith.constant 0 : index
    %1 = vector.load %arg5[%c0_1, %c0_2] : memref<64x128xbf16, #tpu.memory_space<vmem>>, vector<64x128xbf16>
    %c0_3 = arith.constant 0 : index
    %c0_4 = arith.constant 0 : index
    %2 = vector.load %arg7[%c0_3, %c0_4] : memref<128x256xbf16, #tpu.memory_space<vmem>>, vector<128x256xbf16>
    %c0_5 = arith.constant 0 : index
    %c0_6 = arith.constant 0 : index
    %3 = vector.load %arg4[%c0_5, %c0_6] : memref<128x1xf32, #tpu.memory_space<vmem>>, vector<128x1xf32>
    %c0_7 = arith.constant 0 : index
    %c0_8 = arith.constant 0 : index
    %4 = vector.load %arg6[%c0_7, %c0_8] : memref<64x1xf32, #tpu.memory_space<vmem>>, vector<64x1xf32>
    %c0_9 = arith.constant 0 : index
    %c0_10 = arith.constant 0 : index
    %5 = vector.load %arg8[%c0_9, %c0_10] : memref<128x1xf32, #tpu.memory_space<vmem>>, vector<128x1xf32>
    %c0_11 = arith.constant 0 : index
    %c0_12 = arith.constant 0 : index
    %c0_13 = arith.constant 0 : index
    %c0_14 = arith.constant 0 : index
    %6 = vector.load %arg2[%c0_11, %c0_12, %c0_13, %c0_14] : memref<1x4x48x128xbf16, #tpu.memory_space<vmem>>, vector<1x1x48x128xbf16>
    %7 = vector.shape_cast %6 : vector<1x1x48x128xbf16> to vector<48x128xbf16>
    %cst = arith.constant dense<0.000000e+00> : vector<128x128xf32>
    %8 = tpu.matmul %0, %7, %cst {dimension_numbers = #tpu.dot_dimension_numbers<[1], [0], [0], [1], [0, 0, 1, 1], [], []>} : vector<128x48xbf16>, vector<48x128xbf16>, vector<128x128xf32> -> vector<128x128xf32>
    %9 = vector.broadcast %3 : vector<128x1xf32> to vector<128x128xf32>
    %10 = arith.addf %8, %9 : vector<128x128xf32>
    %cst_15 = arith.constant 0.000000e+00 : f32
    %11 = vector.broadcast %cst_15 : f32 to vector<128x128xf32>
    %12 = arith.maximumf %10, %11 : vector<128x128xf32>
    %13 = arith.truncf %12 : vector<128x128xf32> to vector<128x128xbf16>
    %cst_16 = arith.constant dense<0.000000e+00> : vector<64x128xf32>
    %14 = tpu.matmul %1, %13, %cst_16 {dimension_numbers = #tpu.dot_dimension_numbers<[1], [0], [0], [1], [0, 0, 1, 1], [], []>} : vector<64x128xbf16>, vector<128x128xbf16>, vector<64x128xf32> -> vector<64x128xf32>
    %15 = vector.broadcast %4 : vector<64x1xf32> to vector<64x128xf32>
    %16 = arith.addf %14, %15 : vector<64x128xf32>
    %cst_17 = arith.constant 0.000000e+00 : f32
    %17 = vector.broadcast %cst_17 : f32 to vector<64x128xf32>
    %18 = arith.maximumf %16, %17 : vector<64x128xf32>
    %19 = arith.truncf %18 : vector<64x128xf32> to vector<64x128xbf16>
    %c0_18 = arith.constant 0 : index
    %c0_19 = arith.constant 0 : index
    %20 = vector.load %arg10[%c0_18, %c0_19] : memref<256x128xbf16, #tpu.memory_space<vmem>>, vector<64x128xbf16>
    tpu.vector_store %arg10[%c0_18, %c0_19], %19 {strides = array<i32>} : memref<256x128xbf16, #tpu.memory_space<vmem>>, vector<64x128xbf16>,
    %c0_20 = arith.constant 0 : index
    %c1 = arith.constant 1 : index
    %c0_21 = arith.constant 0 : index
    %c0_22 = arith.constant 0 : index
    %21 = vector.load %arg2[%c0_20, %c1, %c0_21, %c0_22] : memref<1x4x48x128xbf16, #tpu.memory_space<vmem>>, vector<1x1x48x128xbf16>
    %22 = vector.shape_cast %21 : vector<1x1x48x128xbf16> to vector<48x128xbf16>
    %cst_23 = arith.constant dense<0.000000e+00> : vector<128x128xf32>
    %23 = tpu.matmul %0, %22, %cst_23 {dimension_numbers = #tpu.dot_dimension_numbers<[1], [0], [0], [1], [0, 0, 1, 1], [], []>} : vector<128x48xbf16>, vector<48x128xbf16>, vector<128x128xf32> -> vector<128x128xf32>
    %24 = vector.broadcast %3 : vector<128x1xf32> to vector<128x128xf32>
    %25 = arith.addf %23, %24 : vector<128x128xf32>
    %cst_24 = arith.constant 0.000000e+00 : f32
    %26 = vector.broadcast %cst_24 : f32 to vector<128x128xf32>
    %27 = arith.maximumf %25, %26 : vector<128x128xf32>
    %28 = arith.truncf %27 : vector<128x128xf32> to vector<128x128xbf16>
    %cst_25 = arith.constant dense<0.000000e+00> : vector<64x128xf32>
    %29 = tpu.matmul %1, %28, %cst_25 {dimension_numbers = #tpu.dot_dimension_numbers<[1], [0], [0], [1], [0, 0, 1, 1], [], []>} : vector<64x128xbf16>, vector<128x128xbf16>, vector<64x128xf32> -> vector<64x128xf32>
    %30 = vector.broadcast %4 : vector<64x1xf32> to vector<64x128xf32>
    %31 = arith.addf %29, %30 : vector<64x128xf32>
    %cst_26 = arith.constant 0.000000e+00 : f32
    %32 = vector.broadcast %cst_26 : f32 to vector<64x128xf32>
    %33 = arith.maximumf %31, %32 : vector<64x128xf32>
    %34 = arith.truncf %33 : vector<64x128xf32> to vector<64x128xbf16>
    %c64 = arith.constant 64 : index
    %c0_27 = arith.constant 0 : index
    %35 = vector.load %arg10[%c64, %c0_27] : memref<256x128xbf16, #tpu.memory_space<vmem>>, vector<64x128xbf16>
    tpu.vector_store %arg10[%c64, %c0_27], %34 {strides = array<i32>} : memref<256x128xbf16, #tpu.memory_space<vmem>>, vector<64x128xbf16>,
    %c0_28 = arith.constant 0 : index
    %c2 = arith.constant 2 : index
    %c0_29 = arith.constant 0 : index
    %c0_30 = arith.constant 0 : index
    %36 = vector.load %arg2[%c0_28, %c2, %c0_29, %c0_30] : memref<1x4x48x128xbf16, #tpu.memory_space<vmem>>, vector<1x1x48x128xbf16>
    %37 = vector.shape_cast %36 : vector<1x1x48x128xbf16> to vector<48x128xbf16>
    %cst_31 = arith.constant dense<0.000000e+00> : vector<128x128xf32>
    %38 = tpu.matmul %0, %37, %cst_31 {dimension_numbers = #tpu.dot_dimension_numbers<[1], [0], [0], [1], [0, 0, 1, 1], [], []>} : vector<128x48xbf16>, vector<48x128xbf16>, vector<128x128xf32> -> vector<128x128xf32>
    %39 = vector.broadcast %3 : vector<128x1xf32> to vector<128x128xf32>
    %40 = arith.addf %38, %39 : vector<128x128xf32>
    %cst_32 = arith.constant 0.000000e+00 : f32
    %41 = vector.broadcast %cst_32 : f32 to vector<128x128xf32>
    %42 = arith.maximumf %40, %41 : vector<128x128xf32>
    %43 = arith.truncf %42 : vector<128x128xf32> to vector<128x128xbf16>
    %cst_33 = arith.constant dense<0.000000e+00> : vector<64x128xf32>
    %44 = tpu.matmul %1, %43, %cst_33 {dimension_numbers = #tpu.dot_dimension_numbers<[1], [0], [0], [1], [0, 0, 1, 1], [], []>} : vector<64x128xbf16>, vector<128x128xbf16>, vector<64x128xf32> -> vector<64x128xf32>
    %45 = vector.broadcast %4 : vector<64x1xf32> to vector<64x128xf32>
    %46 = arith.addf %44, %45 : vector<64x128xf32>
    %cst_34 = arith.constant 0.000000e+00 : f32
    %47 = vector.broadcast %cst_34 : f32 to vector<64x128xf32>
    %48 = arith.maximumf %46, %47 : vector<64x128xf32>
    %49 = arith.truncf %48 : vector<64x128xf32> to vector<64x128xbf16>
    %c128 = arith.constant 128 : index
    %c0_35 = arith.constant 0 : index
    %50 = vector.load %arg10[%c128, %c0_35] : memref<256x128xbf16, #tpu.memory_space<vmem>>, vector<64x128xbf16>
    tpu.vector_store %arg10[%c128, %c0_35], %49 {strides = array<i32>} : memref<256x128xbf16, #tpu.memory_space<vmem>>, vector<64x128xbf16>,
    %c0_36 = arith.constant 0 : index
    %c3 = arith.constant 3 : index
    %c0_37 = arith.constant 0 : index
    %c0_38 = arith.constant 0 : index
    %51 = vector.load %arg2[%c0_36, %c3, %c0_37, %c0_38] : memref<1x4x48x128xbf16, #tpu.memory_space<vmem>>, vector<1x1x48x128xbf16>
    %52 = vector.shape_cast %51 : vector<1x1x48x128xbf16> to vector<48x128xbf16>
    %cst_39 = arith.constant dense<0.000000e+00> : vector<128x128xf32>
    %53 = tpu.matmul %0, %52, %cst_39 {dimension_numbers = #tpu.dot_dimension_numbers<[1], [0], [0], [1], [0, 0, 1, 1], [], []>} : vector<128x48xbf16>, vector<48x128xbf16>, vector<128x128xf32> -> vector<128x128xf32>
    %54 = vector.broadcast %3 : vector<128x1xf32> to vector<128x128xf32>
    %55 = arith.addf %53, %54 : vector<128x128xf32>
    %cst_40 = arith.constant 0.000000e+00 : f32
    %56 = vector.broadcast %cst_40 : f32 to vector<128x128xf32>
    %57 = arith.maximumf %55, %56 : vector<128x128xf32>
    %58 = arith.truncf %57 : vector<128x128xf32> to vector<128x128xbf16>
    %cst_41 = arith.constant dense<0.000000e+00> : vector<64x128xf32>
    %59 = tpu.matmul %1, %58, %cst_41 {dimension_numbers = #tpu.dot_dimension_numbers<[1], [0], [0], [1], [0, 0, 1, 1], [], []>} : vector<64x128xbf16>, vector<128x128xbf16>, vector<64x128xf32> -> vector<64x128xf32>
    %60 = vector.broadcast %4 : vector<64x1xf32> to vector<64x128xf32>
    %61 = arith.addf %59, %60 : vector<64x128xf32>
    %cst_42 = arith.constant 0.000000e+00 : f32
    %62 = vector.broadcast %cst_42 : f32 to vector<64x128xf32>
    %63 = arith.maximumf %61, %62 : vector<64x128xf32>
    %64 = arith.truncf %63 : vector<64x128xf32> to vector<64x128xbf16>
    %c192 = arith.constant 192 : index
    %c0_43 = arith.constant 0 : index
    %65 = vector.load %arg10[%c192, %c0_43] : memref<256x128xbf16, #tpu.memory_space<vmem>>, vector<64x128xbf16>
    tpu.vector_store %arg10[%c192, %c0_43], %64 {strides = array<i32>} : memref<256x128xbf16, #tpu.memory_space<vmem>>, vector<64x128xbf16>,
    %c0_44 = arith.constant 0 : index
    %c0_45 = arith.constant 0 : index
    %66 = vector.load %arg10[%c0_44, %c0_45] : memref<256x128xbf16, #tpu.memory_space<vmem>>, vector<256x128xbf16>
    %cst_46 = arith.constant dense<0.000000e+00> : vector<128x128xf32>
    %67 = tpu.matmul %2, %66, %cst_46 {dimension_numbers = #tpu.dot_dimension_numbers<[1], [0], [0], [1], [0, 0, 1, 1], [], []>} : vector<128x256xbf16>, vector<256x128xbf16>, vector<128x128xf32> -> vector<128x128xf32>
    %68 = vector.broadcast %5 : vector<128x1xf32> to vector<128x128xf32>
    %69 = arith.addf %67, %68 : vector<128x128xf32>
    %cst_47 = arith.constant 0.000000e+00 : f32
    %70 = vector.broadcast %cst_47 : f32 to vector<128x128xf32>
    %71 = arith.maximumf %69, %70 : vector<128x128xf32>
    %c0_48 = arith.constant 0 : index
    %c0_49 = arith.constant 0 : index
    %c0_50 = arith.constant 0 : index
    %72 = vector.load %arg9[%c0_48, %c0_49, %c0_50] : memref<1x128x128xf32, #tpu.memory_space<vmem>>, vector<1x128x128xf32>
    %73 = vector.shape_cast %72 : vector<1x128x128xf32> to vector<128x128xf32>
    %74 = vector.shape_cast %71 : vector<128x128xf32> to vector<1x128x128xf32>
    tpu.vector_store %arg9[%c0_48, %c0_49, %c0_50], %74 {strides = array<i32>} : memref<1x128x128xf32, #tpu.memory_space<vmem>>, vector<1x128x128xf32>,
    return
  }
  func.func @transform_0(%arg0: i32, %arg1: i32) -> (i32, i32, i32, i32) {
    %c0_i32 = arith.constant 0 : i32
    %c0_i32_0 = arith.constant 0 : i32
    %c0_i32_1 = arith.constant 0 : i32
    return %arg0, %c0_i32, %c0_i32_0, %arg1 : i32, i32, i32, i32
  }
  func.func @transform_1(%arg0: i32, %arg1: i32) -> (i32, i32) {
    %c0_i32 = arith.constant 0 : i32
    %c0_i32_0 = arith.constant 0 : i32
    %c0_i32_1 = arith.constant 0 : i32
    return %c0_i32, %c0_i32_0 : i32, i32
  }
  func.func @transform_2(%arg0: i32, %arg1: i32) -> (i32, i32) {
    %c0_i32 = arith.constant 0 : i32
    %c0_i32_0 = arith.constant 0 : i32
    %c0_i32_1 = arith.constant 0 : i32
    return %c0_i32, %c0_i32_0 : i32, i32
  }
  func.func @transform_3(%arg0: i32, %arg1: i32) -> (i32, i32) {
    %c0_i32 = arith.constant 0 : i32
    %c0_i32_0 = arith.constant 0 : i32
    %c0_i32_1 = arith.constant 0 : i32
    return %c0_i32, %c0_i32_0 : i32, i32
  }
  func.func @transform_4(%arg0: i32, %arg1: i32) -> (i32, i32) {
    %c0_i32 = arith.constant 0 : i32
    %c0_i32_0 = arith.constant 0 : i32
    %c0_i32_1 = arith.constant 0 : i32
    return %c0_i32, %c0_i32_0 : i32, i32
  }
  func.func @transform_5(%arg0: i32, %arg1: i32) -> (i32, i32) {
    %c0_i32 = arith.constant 0 : i32
    %c0_i32_0 = arith.constant 0 : i32
    %c0_i32_1 = arith.constant 0 : i32
    return %c0_i32, %c0_i32_0 : i32, i32
  }
  func.func @transform_6(%arg0: i32, %arg1: i32) -> (i32, i32) {
    %c0_i32 = arith.constant 0 : i32
    %c0_i32_0 = arith.constant 0 : i32
    %c0_i32_1 = arith.constant 0 : i32
    return %c0_i32, %c0_i32_0 : i32, i32
  }
  func.func @transform_7(%arg0: i32, %arg1: i32) -> (i32, i32, i32) {
    %c0_i32 = arith.constant 0 : i32
    %c0_i32_0 = arith.constant 0 : i32
    return %arg0, %c0_i32, %arg1 : i32, i32, i32
  }
}

</mosaic_0001>

<llo_original>
// kernel: mul.4
$region0: #{mul.4}
  %s0 = inlined_call_operand.vmem [shape: f32[32,2,2,3], index: 0, kind: input, shape index: {}]
  %s1 = inlined_call_operand.vmem [shape: f32[32,12], index: 1, kind: output, shape index: {}]
  $region1: #{mul.4} parent=0
    #allocation0 [shape = 'u8[16384]{0}', space=vmem, size = 0x4000, scoped, tag = 'scoped mem for input reshape']
    %s3 = sshllo.u32 0, 4
    %s4 = smul.addr 4, 3
    %s5 = scalar_lea.vmem %s0, %s4
    %v6 = vld [vmem:[%s5] sm:%s3]
    %s7 = scalar_lea.vmem [#allocation0], 24
    %8 = vst [vmem:[%s7] sm:%s3] %v6
    %s9 = smul.addr 4, 2
    %s10 = scalar_lea.vmem %s0, %s9
    %v11 = vld [vmem:[%s10] sm:%s3]
    %s12 = scalar_lea.vmem [#allocation0], 16
    %13 = vst [vmem:[%s12] sm:%s3] %v11
    %s14 = scalar_lea.vmem %s0, 4
    %v15 = vld [vmem:[%s14] sm:%s3]
    %s16 = scalar_lea.vmem [#allocation0], 8
    %17 = vst [vmem:[%s16] sm:%s3] %v15
    %v18 = vld [vmem:[%s0] sm:%s3]
    %19 = vst [vmem:[#allocation0] sm:%s3] %v18
    %v20 = vld [vmem:[#allocation0] sm:$0x7]
    %vm21 = vcmask 261120
    %22 = vst.msk [vmem:[%s1] sm:$0x7] %vm21, %v20
    %s23 = scalar_lea.vmem [#allocation0], 8
    %v24 = vld [vmem:[%s23] sm:$0x7]
    %vm25 = vcmask 261120
    %s26 = scalar_lea.vmem %s1, 3
    %27 = vst.msk [vmem:[%s26] sm:$0x7] %vm25, %v24
    %s28 = scalar_lea.vmem [#allocation0], 16
    %v29 = vld [vmem:[%s28] sm:$0x7]
    %vm30 = vcmask 261120
    %s31 = scalar_lea.vmem %s1, 6
    %32 = vst.msk [vmem:[%s31] sm:$0x7] %vm30, %v29
    %s33 = scalar_lea.vmem [#allocation0], 24
    %v34 = vld [vmem:[%s33] sm:$0x7]
    %vm35 = vcmask 261120
    %s36 = scalar_lea.vmem %s1, 9
    %37 = vst.msk [vmem:[%s36] sm:$0x7] %vm35, %v34

// kernel: tile.8
$region0: #{tile.8}
  #allocation0 [shape = 's32[1]{0}', space=sflag, size = 0x4, scoped, tag = 'scoped memory for tile.8']
  %s0 = inlined_call_operand.vmem [shape: f32[32], index: 0, kind: input, shape index: {}]
  %s1 = inlined_call_operand.vmem [shape: f32[4,32], index: 1, kind: output, shape index: {}]
  // Predicated region
  $region2: #{tile.8} parent=0 // pred_check
    _
  $region3: #{tile.8} parent=0 // pred_check_branch
    %3 = sbr.rel (0) target = $region5
  $region4: #{tile.8} parent=0 // pred_region
    _
  $region5: #{tile.8} parent=0 // pred_fallthru
    _
  %v4 = vld [vmem:[%s0] ss:$0 sm:$0xff]
  %5 = vst [vmem:[%s1] sm:$0xf] %v4

// kernel: tile.0
$region0: #{tile.0}
  %s0 = inlined_call_operand.vmem [shape: f32[4,32], index: 0, kind: input, shape index: {}]
  %s1 = inlined_call_operand.vmem [shape: f32[128,1], index: 1, kind: output, shape index: {}]
  $region1: #{tile.0} parent=0
    #allocation0 [shape = 'u8[4096]{0}', space=vmem, size = 0x1000, scoped, tag = 'scoped mem for input reshape']
    %s3 = sshllo.u32 0, 4
    %v4 = vld [vmem:[%s0] sm:%s3]
    %5 = vst [vmem:[#allocation0] sm:%s3] %v4
    %v6 = vld [vmem:[#allocation0] sm:$0xf]
    %vm7 = vcmask 7168
    %8 = vst.msk [vmem:[%s1] sm:$0x1] %vm7, %v6
    %s9 = scalar_lea.vmem %s1, 31
    %10 = vst.msk [vmem:[%s9] sm:$0x2] %vm7, %v6
    %s11 = scalar_lea.vmem %s1, 62
    %12 = vst.msk [vmem:[%s11] sm:$0x4] %vm7, %v6
    %s13 = scalar_lea.vmem %s1, 93
    %14 = vst.msk [vmem:[%s13] sm:$0x8] %vm7, %v6
    %v15 = vld [vmem:[#allocation0] sm:$0xf]
    %16 = vrot.lane.b32.xlu0 %v15, 127
    %v17 = vpop.permute.xlu0 %16
    %vm18 = vcmask 7168
    %s19 = scalar_lea.vmem %s1, 1
    %20 = vst.msk [vmem:[%s19] sm:$0x1] %vm18, %v17
    %s21 = scalar_lea.vmem %s1, 32
    %22 = vst.msk [vmem:[%s21] sm:$0x2] %vm18, %v17
    %s23 = scalar_lea.vmem %s1, 63
    %24 = vst.msk [vmem:[%s23] sm:$0x4] %vm18, %v17
    %s25 = scalar_lea.vmem %s1, 94
    %26 = vst.msk [vmem:[%s25] sm:$0x8] %vm18, %v17
    %v27 = vld [vmem:[#allocation0] sm:$0xf]
    %28 = vrot.lane.b32.xlu0 %v27, 126
    %v29 = vpop.permute.xlu0 %28
    %vm30 = vcmask 7168
    %s31 = scalar_lea.vmem %s1, 2
    %32 = vst.msk [vmem:[%s31] sm:$0x1] %vm30, %v29
    %s33 = scalar_lea.vmem %s1, 33
    %34 = vst.msk [vmem:[%s33] sm:$0x2] %vm30, %v29
    %s35 = scalar_lea.vmem %s1, 64
    %36 = vst.msk [vmem:[%s35] sm:$0x4] %vm30, %v29
    %s37 = scalar_lea.vmem %s1, 95
    %38 = vst.msk [vmem:[%s37] sm:$0x8] %vm30, %v29
    %v39 = vld [vmem:[#allocation0] sm:$0xf]
    %40 = vrot.lane.b32.xlu0 %v39, 125
    %v41 = vpop.permute.xlu0 %40
    %vm42 = vcmask 7168
    %s43 = scalar_lea.vmem %s1, 3
    %44 = vst.msk [vmem:[%s43] sm:$0x1] %vm42, %v41
    %s45 = scalar_lea.vmem %s1, 34
    %46 = vst.msk [vmem:[%s45] sm:$0x2] %vm42, %v41
    %s47 = scalar_lea.vmem %s1, 65
    %48 = vst.msk [vmem:[%s47] sm:$0x4] %vm42, %v41
    %s49 = scalar_lea.vmem %s1, 96
    %50 = vst.msk [vmem:[%s49] sm:$0x8] %vm42, %v41
    %v51 = vld [vmem:[#allocation0] sm:$0xf]
    %52 = vrot.lane.b32.xlu0 %v51, 124
    %v53 = vpop.permute.xlu0 %52
    %vm54 = vcmask 7168
    %s55 = scalar_lea.vmem %s1, 4
    %56 = vst.msk [vmem:[%s55] sm:$0x1] %vm54, %v53
    %s57 = scalar_lea.vmem %s1, 35
    %58 = vst.msk [vmem:[%s57] sm:$0x2] %vm54, %v53
    %s59 = scalar_lea.vmem %s1, 66
    %60 = vst.msk [vmem:[%s59] sm:$0x4] %vm54, %v53
    %s61 = scalar_lea.vmem %s1, 97
    %62 = vst.msk [vmem:[%s61] sm:$0x8] %vm54, %v53
    %v63 = vld [vmem:[#allocation0] sm:$0xf]
    %64 = vrot.lane.b32.xlu0 %v63, 123
    %v65 = vpop.permute.xlu0 %64
    %vm66 = vcmask 7168
    %s67 = scalar_lea.vmem %s1, 5
    %68 = vst.msk [vmem:[%s67] sm:$0x1] %vm66, %v65
    %s69 = scalar_lea.vmem %s1, 36
    %70 = vst.msk [vmem:[%s69] sm:$0x2] %vm66, %v65
    %s71 = scalar_lea.vmem %s1, 67
    %72 = vst.msk [vmem:[%s71] sm:$0x4] %vm66, %v65
    %s73 = scalar_lea.vmem %s1, 98
    %74 = vst.msk [vmem:[%s73] sm:$0x8] %vm66, %v65
    %v75 = vld [vmem:[#allocation0] sm:$0xf]
    %76 = vrot.lane.b32.xlu0 %v75, 122
    %v77 = vpop.permute.xlu0 %76
    %vm78 = vcmask 7168
    %s79 = scalar_lea.vmem %s1, 6
    %80 = vst.msk [vmem:[%s79] sm:$0x1] %vm78, %v77
    %s81 = scalar_lea.vmem %s1, 37
    %82 = vst.msk [vmem:[%s81] sm:$0x2] %vm78, %v77
    %s83 = scalar_lea.vmem %s1, 68
    %84 = vst.msk [vmem:[%s83] sm:$0x4] %vm78, %v77
    %s85 = scalar_lea.vmem %s1, 99
    %86 = vst.msk [vmem:[%s85] sm:$0x8] %vm78, %v77
    %v87 = vld [vmem:[#allocation0] sm:$0xf]
    %88 = vrot.lane.b32.xlu0 %v87, 121
    %v89 = vpop.permute.xlu0 %88
    %vm90 = vcmask 7168
    %s91 = scalar_lea.vmem %s1, 7
    %92 = vst.msk [vmem:[%s91] sm:$0x1] %vm90, %v89
    %s93 = scalar_lea.vmem %s1, 38
    %94 = vst.msk [vmem:[%s93] sm:$0x2] %vm90, %v89
    %s95 = scalar_lea.vmem %s1, 69
    %96 = vst.msk [vmem:[%s95] sm:$0x4] %vm90, %v89
    %s97 = scalar_lea.vmem %s1, 100
    %98 = vst.msk [vmem:[%s97] sm:$0x8] %vm90, %v89
    %v99 = vld [vmem:[#allocation0] sm:$0xf]
    %100 = vrot.lane.b32.xlu0 %v99, 120
    %v101 = vpop.permute.xlu0 %100
    %vm102 = vcmask 7168
    %s103 = scalar_lea.vmem %s1, 8
    %104 = vst.msk [vmem:[%s103] sm:$0x1] %vm102, %v101
    %s105 = scalar_lea.vmem %s1, 39
    %106 = vst.msk [vmem:[%s105] sm:$0x2] %vm102, %v101
    %s107 = scalar_lea.vmem %s1, 70
    %108 = vst.msk [vmem:[%s107] sm:$0x4] %vm102, %v101
    %s109 = scalar_lea.vmem %s1, 101
    %110 = vst.msk [vmem:[%s109] sm:$0x8] %vm102, %v101
    %v111 = vld [vmem:[#allocation0] sm:$0xf]
    %112 = vrot.lane.b32.xlu0 %v111, 119
    %v113 = vpop.permute.xlu0 %112
    %vm114 = vcmask 7168
    %s115 = scalar_lea.vmem %s1, 9
    %116 = vst.msk [vmem:[%s115] sm:$0x1] %vm114, %v113
    %s117 = scalar_lea.vmem %s1, 40
    %118 = vst.msk [vmem:[%s117] sm:$0x2] %vm114, %v113
    %s119 = scalar_lea.vmem %s1, 71
    %120 = vst.msk [vmem:[%s119] sm:$0x4] %vm114, %v113
    %s121 = scalar_lea.vmem %s1, 102
    %122 = vst.msk [vmem:[%s121] sm:$0x8] %vm114, %v113
    %v123 = vld [vmem:[#allocation0] sm:$0xf]
    %124 = vrot.lane.b32.xlu0 %v123, 118
    %v125 = vpop.permute.xlu0 %124
    %vm126 = vcmask 7168
    %s127 = scalar_lea.vmem %s1, 10
    %128 = vst.msk [vmem:[%s127] sm:$0x1] %vm126, %v125
    %s129 = scalar_lea.vmem %s1, 41
    %130 = vst.msk [vmem:[%s129] sm:$0x2] %vm126, %v125
    %s131 = scalar_lea.vmem %s1, 72
    %132 = vst.msk [vmem:[%s131] sm:$0x4] %vm126, %v125
    %s133 = scalar_lea.vmem %s1, 103
    %134 = vst.msk [vmem:[%s133] sm:$0x8] %vm126, %v125
    %v135 = vld [vmem:[#allocation0] sm:$0xf]
    %136 = vrot.lane.b32.xlu0 %v135, 117
    %v137 = vpop.permute.xlu0 %136
    %vm138 = vcmask 7168
    %s139 = scalar_lea.vmem %s1, 11
    %140 = vst.msk [vmem:[%s139] sm:$0x1] %vm138, %v137
    %s141 = scalar_lea.vmem %s1, 42
    %142 = vst.msk [vmem:[%s141] sm:$0x2] %vm138, %v137
    %s143 = scalar_lea.vmem %s1, 73
    %144 = vst.msk [vmem:[%s143] sm:$0x4] %vm138, %v137
    %s145 = scalar_lea.vmem %s1, 104
    %146 = vst.msk [vmem:[%s145] sm:$0x8] %vm138, %v137
    %v147 = vld [vmem:[#allocation0] sm:$0xf]
    %148 = vrot.lane.b32.xlu0 %v147, 116
    %v149 = vpop.permute.xlu0 %148
    %vm150 = vcmask 7168
    %s151 = scalar_lea.vmem %s1, 12
    %152 = vst.msk [vmem:[%s151] sm:$0x1] %vm150, %v149
    %s153 = scalar_lea.vmem %s1, 43
    %154 = vst.msk [vmem:[%s153] sm:$0x2] %vm150, %v149
    %s155 = scalar_lea.vmem %s1, 74
    %156 = vst.msk [vmem:[%s155] sm:$0x4] %vm150, %v149
    %s157 = scalar_lea.vmem %s1, 105
    %158 = vst.msk [vmem:[%s157] sm:$0x8] %vm150, %v149
    %v159 = vld [vmem:[#allocation0] sm:$0xf]
    %160 = vrot.lane.b32.xlu0 %v159, 115
    %v161 = vpop.permute.xlu0 %160
    %vm162 = vcmask 7168
    %s163 = scalar_lea.vmem %s1, 13
    %164 = vst.msk [vmem:[%s163] sm:$0x1] %vm162, %v161
    %s165 = scalar_lea.vmem %s1, 44
    %166 = vst.msk [vmem:[%s165] sm:$0x2] %vm162, %v161
    %s167 = scalar_lea.vmem %s1, 75
    %168 = vst.msk [vmem:[%s167] sm:$0x4] %vm162, %v161
    %s169 = scalar_lea.vmem %s1, 106
    %170 = vst.msk [vmem:[%s169] sm:$0x8] %vm162, %v161
    %v171 = vld [vmem:[#allocation0] sm:$0xf]
    %172 = vrot.lane.b32.xlu0 %v171, 114
    %v173 = vpop.permute.xlu0 %172
    %vm174 = vcmask 7168
    %s175 = scalar_lea.vmem %s1, 14
    %176 = vst.msk [vmem:[%s175] sm:$0x1] %vm174, %v173
    %s177 = scalar_lea.vmem %s1, 45
    %178 = vst.msk [vmem:[%s177] sm:$0x2] %vm174, %v173
    %s179 = scalar_lea.vmem %s1, 76
    %180 = vst.msk [vmem:[%s179] sm:$0x4] %vm174, %v173
    %s181 = scalar_lea.vmem %s1, 107
    %182 = vst.msk [vmem:[%s181] sm:$0x8] %vm174, %v173
    %v183 = vld [vmem:[#allocation0] sm:$0xf]
    %184 = vrot.lane.b32.xlu0 %v183, 113
    %v185 = vpop.permute.xlu0 %184
    %vm186 = vcmask 7168
    %s187 = scalar_lea.vmem %s1, 15
    %188 = vst.msk [vmem:[%s187] sm:$0x1] %vm186, %v185
    %s189 = scalar_lea.vmem %s1, 46
    %190 = vst.msk [vmem:[%s189] sm:$0x2] %vm186, %v185
    %s191 = scalar_lea.vmem %s1, 77
    %192 = vst.msk [vmem:[%s191] sm:$0x4] %vm186, %v185
    %s193 = scalar_lea.vmem %s1, 108
    %194 = vst.msk [vmem:[%s193] sm:$0x8] %vm186, %v185
    %v195 = vld [vmem:[#allocation0] sm:$0xf]
    %196 = vrot.lane.b32.xlu0 %v195, 112
    %v197 = vpop.permute.xlu0 %196
    %vm198 = vcmask 7168
    %s199 = scalar_lea.vmem %s1, 16
    %200 = vst.msk [vmem:[%s199] sm:$0x1] %vm198, %v197
    %s201 = scalar_lea.vmem %s1, 47
    %202 = vst.msk [vmem:[%s201] sm:$0x2] %vm198, %v197
    %s203 = scalar_lea.vmem %s1, 78
    %204 = vst.msk [vmem:[%s203] sm:$0x4] %vm198, %v197
    %s205 = scalar_lea.vmem %s1, 109
    %206 = vst.msk [vmem:[%s205] sm:$0x8] %vm198, %v197
    %v207 = vld [vmem:[#allocation0] sm:$0xf]
    %208 = vrot.lane.b32.xlu0 %v207, 111
    %v209 = vpop.permute.xlu0 %208
    %vm210 = vcmask 7168
    %s211 = scalar_lea.vmem %s1, 17
    %212 = vst.msk [vmem:[%s211] sm:$0x1] %vm210, %v209
    %s213 = scalar_lea.vmem %s1, 48
    %214 = vst.msk [vmem:[%s213] sm:$0x2] %vm210, %v209
    %s215 = scalar_lea.vmem %s1, 79
    %216 = vst.msk [vmem:[%s215] sm:$0x4] %vm210, %v209
    %s217 = scalar_lea.vmem %s1, 110
    %218 = vst.msk [vmem:[%s217] sm:$0x8] %vm210, %v209
    %v219 = vld [vmem:[#allocation0] sm:$0xf]
    %220 = vrot.lane.b32.xlu0 %v219, 110
    %v221 = vpop.permute.xlu0 %220
    %vm222 = vcmask 7168
    %s223 = scalar_lea.vmem %s1, 18
    %224 = vst.msk [vmem:[%s223] sm:$0x1] %vm222, %v221
    %s225 = scalar_lea.vmem %s1, 49
    %226 = vst.msk [vmem:[%s225] sm:$0x2] %vm222, %v221
    %s227 = scalar_lea.vmem %s1, 80
    %228 = vst.msk [vmem:[%s227] sm:$0x4] %vm222, %v221
    %s229 = scalar_lea.vmem %s1, 111
    %230 = vst.msk [vmem:[%s229] sm:$0x8] %vm222, %v221
    %v231 = vld [vmem:[#allocation0] sm:$0xf]
    %232 = vrot.lane.b32.xlu0 %v231, 109
    %v233 = vpop.permute.xlu0 %232
    %vm234 = vcmask 7168
    %s235 = scalar_lea.vmem %s1, 19
    %236 = vst.msk [vmem:[%s235] sm:$0x1] %vm234, %v233
    %s237 = scalar_lea.vmem %s1, 50
    %238 = vst.msk [vmem:[%s237] sm:$0x2] %vm234, %v233
    %s239 = scalar_lea.vmem %s1, 81
    %240 = vst.msk [vmem:[%s239] sm:$0x4] %vm234, %v233
    %s241 = scalar_lea.vmem %s1, 112
    %242 = vst.msk [vmem:[%s241] sm:$0x8] %vm234, %v233
    %v243 = vld [vmem:[#allocation0] sm:$0xf]
    %244 = vrot.lane.b32.xlu0 %v243, 108
    %v245 = vpop.permute.xlu0 %244
    %vm246 = vcmask 7168
    %s247 = scalar_lea.vmem %s1, 20
    %248 = vst.msk [vmem:[%s247] sm:$0x1] %vm246, %v245
    %s249 = scalar_lea.vmem %s1, 51
    %250 = vst.msk [vmem:[%s249] sm:$0x2] %vm246, %v245
    %s251 = scalar_lea.vmem %s1, 82
    %252 = vst.msk [vmem:[%s251] sm:$0x4] %vm246, %v245
    %s253 = scalar_lea.vmem %s1, 113
    %254 = vst.msk [vmem:[%s253] sm:$0x8] %vm246, %v245
    %v255 = vld [vmem:[#allocation0] sm:$0xf]
    %256 = vrot.lane.b32.xlu0 %v255, 107
    %v257 = vpop.permute.xlu0 %256
    %vm258 = vcmask 7168
    %s259 = scalar_lea.vmem %s1, 21
    %260 = vst.msk [vmem:[%s259] sm:$0x1] %vm258, %v257
    %s261 = scalar_lea.vmem %s1, 52
    %262 = vst.msk [vmem:[%s261] sm:$0x2] %vm258, %v257
    %s263 = scalar_lea.vmem %s1, 83
    %264 = vst.msk [vmem:[%s263] sm:$0x4] %vm258, %v257
    %s265 = scalar_lea.vmem %s1, 114
    %266 = vst.msk [vmem:[%s265] sm:$0x8] %vm258, %v257
    %v267 = vld [vmem:[#allocation0] sm:$0xf]
    %268 = vrot.lane.b32.xlu0 %v267, 106
    %v269 = vpop.permute.xlu0 %268
    %vm270 = vcmask 7168
    %s271 = scalar_lea.vmem %s1, 22
    %272 = vst.msk [vmem:[%s271] sm:$0x1] %vm270, %v269
    %s273 = scalar_lea.vmem %s1, 53
    %274 = vst.msk [vmem:[%s273] sm:$0x2] %vm270, %v269
    %s275 = scalar_lea.vmem %s1, 84
    %276 = vst.msk [vmem:[%s275] sm:$0x4] %vm270, %v269
    %s277 = scalar_lea.vmem %s1, 115
    %278 = vst.msk [vmem:[%s277] sm:$0x8] %vm270, %v269
    %v279 = vld [vmem:[#allocation0] sm:$0xf]
    %280 = vrot.lane.b32.xlu0 %v279, 105
    %v281 = vpop.permute.xlu0 %280
    %vm282 = vcmask 7168
    %s283 = scalar_lea.vmem %s1, 23
    %284 = vst.msk [vmem:[%s283] sm:$0x1] %vm282, %v281
    %s285 = scalar_lea.vmem %s1, 54
    %286 = vst.msk [vmem:[%s285] sm:$0x2] %vm282, %v281
    %s287 = scalar_lea.vmem %s1, 85
    %288 = vst.msk [vmem:[%s287] sm:$0x4] %vm282, %v281
    %s289 = scalar_lea.vmem %s1, 116
    %290 = vst.msk [vmem:[%s289] sm:$0x8] %vm282, %v281
    %v291 = vld [vmem:[#allocation0] sm:$0xf]
    %292 = vrot.lane.b32.xlu0 %v291, 104
    %v293 = vpop.permute.xlu0 %292
    %vm294 = vcmask 7168
    %s295 = scalar_lea.vmem %s1, 24
    %296 = vst.msk [vmem:[%s295] sm:$0x1] %vm294, %v293
    %s297 = scalar_lea.vmem %s1, 55
    %298 = vst.msk [vmem:[%s297] sm:$0x2] %vm294, %v293
    %s299 = scalar_lea.vmem %s1, 86
    %300 = vst.msk [vmem:[%s299] sm:$0x4] %vm294, %v293
    %s301 = scalar_lea.vmem %s1, 117
    %302 = vst.msk [vmem:[%s301] sm:$0x8] %vm294, %v293
    %v303 = vld [vmem:[#allocation0] sm:$0xf]
    %304 = vrot.lane.b32.xlu0 %v303, 103
    %v305 = vpop.permute.xlu0 %304
    %vm306 = vcmask 7168
    %s307 = scalar_lea.vmem %s1, 25
    %308 = vst.msk [vmem:[%s307] sm:$0x1] %vm306, %v305
    %s309 = scalar_lea.vmem %s1, 56
    %310 = vst.msk [vmem:[%s309] sm:$0x2] %vm306, %v305
    %s311 = scalar_lea.vmem %s1, 87
    %312 = vst.msk [vmem:[%s311] sm:$0x4] %vm306, %v305
    %s313 = scalar_lea.vmem %s1, 118
    %314 = vst.msk [vmem:[%s313] sm:$0x8] %vm306, %v305
    %v315 = vld [vmem:[#allocation0] sm:$0xf]
    %316 = vrot.lane.b32.xlu0 %v315, 102
    %v317 = vpop.permute.xlu0 %316
    %vm318 = vcmask 7168
    %s319 = scalar_lea.vmem %s1, 26
    %320 = vst.msk [vmem:[%s319] sm:$0x1] %vm318, %v317
    %s321 = scalar_lea.vmem %s1, 57
    %322 = vst.msk [vmem:[%s321] sm:$0x2] %vm318, %v317
    %s323 = scalar_lea.vmem %s1, 88
    %324 = vst.msk [vmem:[%s323] sm:$0x4] %vm318, %v317
    %s325 = scalar_lea.vmem %s1, 119
    %326 = vst.msk [vmem:[%s325] sm:$0x8] %vm318, %v317
    %v327 = vld [vmem:[#allocation0] sm:$0xf]
    %328 = vrot.lane.b32.xlu0 %v327, 101
    %v329 = vpop.permute.xlu0 %328
    %vm330 = vcmask 7168
    %s331 = scalar_lea.vmem %s1, 27
    %332 = vst.msk [vmem:[%s331] sm:$0x1] %vm330, %v329
    %s333 = scalar_lea.vmem %s1, 58
    %334 = vst.msk [vmem:[%s333] sm:$0x2] %vm330, %v329
    %s335 = scalar_lea.vmem %s1, 89
    %336 = vst.msk [vmem:[%s335] sm:$0x4] %vm330, %v329
    %s337 = scalar_lea.vmem %s1, 120
    %338 = vst.msk [vmem:[%s337] sm:$0x8] %vm330, %v329
    %v339 = vld [vmem:[#allocation0] sm:$0xf]
    %340 = vrot.lane.b32.xlu0 %v339, 100
    %v341 = vpop.permute.xlu0 %340
    %vm342 = vcmask 7168
    %s343 = scalar_lea.vmem %s1, 28
    %344 = vst.msk [vmem:[%s343] sm:$0x1] %vm342, %v341
    %s345 = scalar_lea.vmem %s1, 59
    %346 = vst.msk [vmem:[%s345] sm:$0x2] %vm342, %v341
    %s347 = scalar_lea.vmem %s1, 90
    %348 = vst.msk [vmem:[%s347] sm:$0x4] %vm342, %v341
    %s349 = scalar_lea.vmem %s1, 121
    %350 = vst.msk [vmem:[%s349] sm:$0x8] %vm342, %v341
    %v351 = vld [vmem:[#allocation0] sm:$0xf]
    %352 = vrot.lane.b32.xlu0 %v351, 99
    %v353 = vpop.permute.xlu0 %352
    %vm354 = vcmask 7168
    %s355 = scalar_lea.vmem %s1, 29
    %356 = vst.msk [vmem:[%s355] sm:$0x1] %vm354, %v353
    %s357 = scalar_lea.vmem %s1, 60
    %358 = vst.msk [vmem:[%s357] sm:$0x2] %vm354, %v353
    %s359 = scalar_lea.vmem %s1, 91
    %360 = vst.msk [vmem:[%s359] sm:$0x4] %vm354, %v353
    %s361 = scalar_lea.vmem %s1, 122
    %362 = vst.msk [vmem:[%s361] sm:$0x8] %vm354, %v353
    %v363 = vld [vmem:[#allocation0] sm:$0xf]
    %364 = vrot.lane.b32.xlu0 %v363, 98
    %v365 = vpop.permute.xlu0 %364
    %vm366 = vcmask 7168
    %s367 = scalar_lea.vmem %s1, 30
    %368 = vst.msk [vmem:[%s367] sm:$0x1] %vm366, %v365
    %s369 = scalar_lea.vmem %s1, 61
    %370 = vst.msk [vmem:[%s369] sm:$0x2] %vm366, %v365
    %s371 = scalar_lea.vmem %s1, 92
    %372 = vst.msk [vmem:[%s371] sm:$0x4] %vm366, %v365
    %s373 = scalar_lea.vmem %s1, 123
    %374 = vst.msk [vmem:[%s373] sm:$0x8] %vm366, %v365
    %v375 = vld [vmem:[#allocation0] sm:$0xf]
    %376 = vrot.lane.b32.xlu0 %v375, 97
    %v377 = vpop.permute.xlu0 %376
    %vm378 = vcmask 7168
    %s379 = scalar_lea.vmem %s1, 31
    %380 = vst.msk [vmem:[%s379] sm:$0x1] %vm378, %v377
    %s381 = scalar_lea.vmem %s1, 62
    %382 = vst.msk [vmem:[%s381] sm:$0x2] %vm378, %v377
    %s383 = scalar_lea.vmem %s1, 93
    %384 = vst.msk [vmem:[%s383] sm:$0x4] %vm378, %v377
    %s385 = scalar_lea.vmem %s1, 124
    %386 = vst.msk [vmem:[%s385] sm:$0x8] %vm378, %v377

// kernel: vhrdownnet5_forward.1
$region0: #{vhrdownnet5_forward.1}
  #allocation0 [shape = 'u32[]', space=smem, size = 0x4, offset = 0x4, fixed_abs, tag = 'smem constant byte address 0x4 - core index']
  #allocation1 [shape = 'u32[144,128]{1,0:T(1,128)}', space=vmem, size = 0x12000, scoped, tag = 'internal scratch']
  #allocation2 [shape = 'bf16[256,128]{1,0:T(16,128)(2,1)}', space=vmem, size = 0x10000, scoped, tag = 'scratch operand']
  %s0 = inlined_call_operand.vmem [shape: bf16[2,4,48,128], index: 0, kind: input, shape index: {}]
  %s1 = inlined_call_operand.vmem [shape: bf16[128,48], index: 1, kind: input, shape index: {}]
  %s2 = inlined_call_operand.vmem [shape: f32[128,1], index: 2, kind: input, shape index: {}]
  %s3 = inlined_call_operand.vmem [shape: bf16[64,128], index: 3, kind: input, shape index: {}]
  %s4 = inlined_call_operand.vmem [shape: f32[64,1], index: 4, kind: input, shape index: {}]
  %s5 = inlined_call_operand.vmem [shape: bf16[128,256], index: 5, kind: input, shape index: {}]
  %s6 = inlined_call_operand.vmem [shape: f32[128,1], index: 6, kind: input, shape index: {}]
  %s7 = inlined_call_operand.vmem [shape: f32[2,128,128], index: 7, kind: output, shape index: {}]
  %s8 = sld [smem:[#allocation0]]
  $region61: #{vhrdownnet5_forward.1} parent=0
    _
  %s10 = ssub.s32 1, %s8
  %s11 = scalar_select 0, %s10, %s8
  loop: start=0, step=1, limit=4
  $region2: #{vhrdownnet5_forward.1} parent=0 // loop_pre_header
    _
  $region3: #{vhrdownnet5_forward.1} parent=0 // loop_header
    %s13 = sphi 0, %s17
    %p14 = scmp.ge.s32.totalorder %s13, 4
    %s20 = sphi 0, %s32
    %s21 = sphi 0, %s28
    %s22 = sphi 0, %s20
    %s23 = sphi 0, %s21
    %s24 = sphi 0, %s22
    %s25 = sphi 0, %s23
    %s37 = sphi 0, %s39
    %s40 = sphi 0, %s37
    %s41 = sphi 0, %s40
    %s57 = sphi 0, %s41
    %s61 = sphi 0, %s61
    %s63 = sphi 0, %s61
    %s64 = sphi 0, %s63
    %s78 = sphi 0, %s64
    %s82 = sphi 0, %s82
    %s84 = sphi 0, %s82
    %s85 = sphi 0, %s84
    %s99 = sphi 0, %s85
    %s103 = sphi 0, %s103
    %s105 = sphi 0, %s103
    %s106 = sphi 0, %s105
    %s120 = sphi 0, %s106
    %s124 = sphi 0, %s124
    %s126 = sphi 0, %s124
    %s127 = sphi 0, %s126
    %s141 = sphi 0, %s127
    %s145 = sphi 0, %s145
    %s147 = sphi 0, %s145
    %s148 = sphi 0, %s147
    %s162 = sphi 0, %s148
    %s166 = sphi 0, %s166
    %s168 = sphi 0, %s166
    %s169 = sphi 0, %s168
    %s183 = sphi 0, %s169
    %s191 = sphi 0, %s193
    %s194 = sphi 0, %s191
    %s195 = sphi 0, %s194
    %s211 = sphi 0, %s195
  $region4: #{vhrdownnet5_forward.1} parent=0 // loop_header_branch
    %16 = sbr.rel (%p14) target = $region8
  $region5: #{vhrdownnet5_forward.1} parent=0 // loop_body
    %s18 = ssub.s32 %s13, 1
    %s19 = ssub.s32 %s13, 2
    %s26 = sadd.s32 1, %s21
    %p27 = scmp.ge.s32.totalorder %s26, 1
    %s28 = scalar_select %p27, 0, %s26
    %s29 = sadd.s32 1, %s20
    %s30 = scalar_select %p27, %s29, %s20
    %p31 = scmp.ge.s32.totalorder %s30, 2
    %s32 = scalar_select %p31, 0, %s30
    %s33 = ssub.s32 %s20, %s32
    %s34 = ssub.s32 %s21, %s28
    %s35 = sor.u32 %s33, %s34
    %p36 = scmp.eq.s32.totalorder %s35, 0
    %s38 = sadd.s32 %s37, 1
    %s39 = scalar_select %p36, %s37, %s38
    %p42 = pneg %p36
    %p43 = scmp.eq.s32.totalorder %s13, 1
    %p44 = por %p42, %p43
    %p45 = scmp.ne.s32.totalorder %s37, %s40
    %p46 = scmp.eq.s32.totalorder %s13, 0
    %p47 = por %p45, %p46
    %p48 = scmp.ne.s32.totalorder %s37, %s40
    %p49 = scmp.eq.s32.totalorder %s18, 1
    %p50 = por %p48, %p49
    %p51 = scmp.ne.s32.totalorder %s40, %s41
    %p52 = scmp.eq.s32.totalorder %s18, 0
    %p53 = por %p51, %p52
    %p54 = scmp.ne.s32.totalorder %s40, %s41
    %p55 = scmp.eq.s32.totalorder %s19, 1
    %p56 = por %p54, %p55
    %p58 = scmp.ne.s32.totalorder %s41, %s57
    %p59 = scmp.eq.s32.totalorder %s19, 0
    %p60 = por %p58, %p59
    %s62 = sadd.s32 %s61, 1
    %p65 = scmp.eq.s32.totalorder %s13, 1
    %p66 = scmp.ne.s32.totalorder %s61, %s63
    %p67 = scmp.eq.s32.totalorder %s13, 0
    %p68 = por %p66, %p67
    %p69 = scmp.ne.s32.totalorder %s61, %s63
    %p70 = scmp.eq.s32.totalorder %s18, 1
    %p71 = por %p69, %p70
    %p72 = scmp.ne.s32.totalorder %s63, %s64
    %p73 = scmp.eq.s32.totalorder %s18, 0
    %p74 = por %p72, %p73
    %p75 = scmp.ne.s32.totalorder %s63, %s64
    %p76 = scmp.eq.s32.totalorder %s19, 1
    %p77 = por %p75, %p76
    %p79 = scmp.ne.s32.totalorder %s64, %s78
    %p80 = scmp.eq.s32.totalorder %s19, 0
    %p81 = por %p79, %p80
    %s83 = sadd.s32 %s82, 1
    %p86 = scmp.eq.s32.totalorder %s13, 1
    %p87 = scmp.ne.s32.totalorder %s82, %s84
    %p88 = scmp.eq.s32.totalorder %s13, 0
    %p89 = por %p87, %p88
    %p90 = scmp.ne.s32.totalorder %s82, %s84
    %p91 = scmp.eq.s32.totalorder %s18, 1
    %p92 = por %p90, %p91
    %p93 = scmp.ne.s32.totalorder %s84, %s85
    %p94 = scmp.eq.s32.totalorder %s18, 0
    %p95 = por %p93, %p94
    %p96 = scmp.ne.s32.totalorder %s84, %s85
    %p97 = scmp.eq.s32.totalorder %s19, 1
    %p98 = por %p96, %p97
    %p100 = scmp.ne.s32.totalorder %s85, %s99
    %p101 = scmp.eq.s32.totalorder %s19, 0
    %p102 = por %p100, %p101
    %s104 = sadd.s32 %s103, 1
    %p107 = scmp.eq.s32.totalorder %s13, 1
    %p108 = scmp.ne.s32.totalorder %s103, %s105
    %p109 = scmp.eq.s32.totalorder %s13, 0
    %p110 = por %p108, %p109
    %p111 = scmp.ne.s32.totalorder %s103, %s105
    %p112 = scmp.eq.s32.totalorder %s18, 1
    %p113 = por %p111, %p112
    %p114 = scmp.ne.s32.totalorder %s105, %s106
    %p115 = scmp.eq.s32.totalorder %s18, 0
    %p116 = por %p114, %p115
    %p117 = scmp.ne.s32.totalorder %s105, %s106
    %p118 = scmp.eq.s32.totalorder %s19, 1
    %p119 = por %p117, %p118
    %p121 = scmp.ne.s32.totalorder %s106, %s120
    %p122 = scmp.eq.s32.totalorder %s19, 0
    %p123 = por %p121, %p122
    %s125 = sadd.s32 %s124, 1
    %p128 = scmp.eq.s32.totalorder %s13, 1
    %p129 = scmp.ne.s32.totalorder %s124, %s126
    %p130 = scmp.eq.s32.totalorder %s13, 0
    %p131 = por %p129, %p130
    %p132 = scmp.ne.s32.totalorder %s124, %s126
    %p133 = scmp.eq.s32.totalorder %s18, 1
    %p134 = por %p132, %p133
    %p135 = scmp.ne.s32.totalorder %s126, %s127
    %p136 = scmp.eq.s32.totalorder %s18, 0
    %p137 = por %p135, %p136
    %p138 = scmp.ne.s32.totalorder %s126, %s127
    %p139 = scmp.eq.s32.totalorder %s19, 1
    %p140 = por %p138, %p139
    %p142 = scmp.ne.s32.totalorder %s127, %s141
    %p143 = scmp.eq.s32.totalorder %s19, 0
    %p144 = por %p142, %p143
    %s146 = sadd.s32 %s145, 1
    %p149 = scmp.eq.s32.totalorder %s13, 1
    %p150 = scmp.ne.s32.totalorder %s145, %s147
    %p151 = scmp.eq.s32.totalorder %s13, 0
    %p152 = por %p150, %p151
    %p153 = scmp.ne.s32.totalorder %s145, %s147
    %p154 = scmp.eq.s32.totalorder %s18, 1
    %p155 = por %p153, %p154
    %p156 = scmp.ne.s32.totalorder %s147, %s148
    %p157 = scmp.eq.s32.totalorder %s18, 0
    %p158 = por %p156, %p157
    %p159 = scmp.ne.s32.totalorder %s147, %s148
    %p160 = scmp.eq.s32.totalorder %s19, 1
    %p161 = por %p159, %p160
    %p163 = scmp.ne.s32.totalorder %s148, %s162
    %p164 = scmp.eq.s32.totalorder %s19, 0
    %p165 = por %p163, %p164
    %s167 = sadd.s32 %s166, 1
    %p170 = scmp.eq.s32.totalorder %s13, 1
    %p171 = scmp.ne.s32.totalorder %s166, %s168
    %p172 = scmp.eq.s32.totalorder %s13, 0
    %p173 = por %p171, %p172
    %p174 = scmp.ne.s32.totalorder %s166, %s168
    %p175 = scmp.eq.s32.totalorder %s18, 1
    %p176 = por %p174, %p175
    %p177 = scmp.ne.s32.totalorder %s168, %s169
    %p178 = scmp.eq.s32.totalorder %s18, 0
    %p179 = por %p177, %p178
    %p180 = scmp.ne.s32.totalorder %s168, %s169
    %p181 = scmp.eq.s32.totalorder %s19, 1
    %p182 = por %p180, %p181
    %p184 = scmp.ne.s32.totalorder %s169, %s183
    %p185 = scmp.eq.s32.totalorder %s19, 0
    %p186 = por %p184, %p185
    %s187 = ssub.s32 %s20, %s32
    %s188 = ssub.s32 %s21, %s28
    %s189 = sor.u32 %s187, %s188
    %p190 = scmp.eq.s32.totalorder %s189, 0
    %s192 = sadd.s32 %s191, 1
    %s193 = scalar_select %p190, %s191, %s192
    %p196 = pneg %p190
    %p197 = scmp.eq.s32.totalorder %s13, 1
    %p198 = por %p196, %p197
    %p199 = scmp.ne.s32.totalorder %s191, %s194
    %p200 = scmp.eq.s32.totalorder %s13, 0
    %p201 = por %p199, %p200
    %p202 = scmp.ne.s32.totalorder %s191, %s194
    %p203 = scmp.eq.s32.totalorder %s18, 1
    %p204 = por %p202, %p203
    %p205 = scmp.ne.s32.totalorder %s194, %s195
    %p206 = scmp.eq.s32.totalorder %s18, 0
    %p207 = por %p205, %p206
    %p208 = scmp.ne.s32.totalorder %s194, %s195
    %p209 = scmp.eq.s32.totalorder %s19, 1
    %p210 = por %p208, %p209
    %p212 = scmp.ne.s32.totalorder %s195, %s211
    %p213 = scmp.eq.s32.totalorder %s19, 0
    %p214 = por %p212, %p213
    %p215 = scmp.le.s32.totalorder 1, %s13
    %p216 = scmp.lt.s32.totalorder %s13, 3
    %p217 = pnand %p215, %p216
    %p218 = pneg %p217
    // Predicated region
    $region9: #{vhrdownnet5_forward.1} parent=5 // pred_check
      _
    $region10: #{vhrdownnet5_forward.1} parent=5 // pred_check_branch
      %220 = sbr.rel (%p217) target = $region12
    $region11: #{vhrdownnet5_forward.1} parent=5 // pred_region
      %s221 = ssub.s32 %s13, 1
      // Predicated region
      $region13: #{vhrdownnet5_forward.1} parent=11 // pred_check
        %p222 = pneg %p74
      $region14: #{vhrdownnet5_forward.1} parent=11 // pred_check_branch
        %224 = sbr.rel (%p222) target = $region16
      $region15: #{vhrdownnet5_forward.1} parent=11 // pred_region
        _
      $region16: #{vhrdownnet5_forward.1} parent=11 // pred_fallthru
        _
      // Predicated region
      $region17: #{vhrdownnet5_forward.1} parent=11 // pred_check
        %p225 = pneg %p95
      $region18: #{vhrdownnet5_forward.1} parent=11 // pred_check_branch
        %227 = sbr.rel (%p225) target = $region20
      $region19: #{vhrdownnet5_forward.1} parent=11 // pred_region
        _
      $region20: #{vhrdownnet5_forward.1} parent=11 // pred_fallthru
        _
      // Predicated region
      $region21: #{vhrdownnet5_forward.1} parent=11 // pred_check
        %p228 = pneg %p116
      $region22: #{vhrdownnet5_forward.1} parent=11 // pred_check_branch
        %230 = sbr.rel (%p228) target = $region24
      $region23: #{vhrdownnet5_forward.1} parent=11 // pred_region
        _
      $region24: #{vhrdownnet5_forward.1} parent=11 // pred_fallthru
        _
      // Predicated region
      $region25: #{vhrdownnet5_forward.1} parent=11 // pred_check
        %p231 = pneg %p137
      $region26: #{vhrdownnet5_forward.1} parent=11 // pred_check_branch
        %233 = sbr.rel (%p231) target = $region28
      $region27: #{vhrdownnet5_forward.1} parent=11 // pred_region
        _
      $region28: #{vhrdownnet5_forward.1} parent=11 // pred_fallthru
        _
      // Predicated region
      $region29: #{vhrdownnet5_forward.1} parent=11 // pred_check
        %p234 = pneg %p158
      $region30: #{vhrdownnet5_forward.1} parent=11 // pred_check_branch
        %236 = sbr.rel (%p234) target = $region32
      $region31: #{vhrdownnet5_forward.1} parent=11 // pred_region
        _
      $region32: #{vhrdownnet5_forward.1} parent=11 // pred_fallthru
        _
      // Predicated region
      $region33: #{vhrdownnet5_forward.1} parent=11 // pred_check
        %p237 = pneg %p179
      $region34: #{vhrdownnet5_forward.1} parent=11 // pred_check_branch
        %239 = sbr.rel (%p237) target = $region36
      $region35: #{vhrdownnet5_forward.1} parent=11 // pred_region
        _
      $region36: #{vhrdownnet5_forward.1} parent=11 // pred_fallthru
        _
    $region12: #{vhrdownnet5_forward.1} parent=5 // pred_fallthru
      _
    %p240 = scmp.lt.s32.totalorder %s13, 2
    // Predicated region
    $region37: #{vhrdownnet5_forward.1} parent=5 // pred_check
      %p241 = pneg %p240
    $region38: #{vhrdownnet5_forward.1} parent=5 // pred_check_branch
      %243 = sbr.rel (%p241) target = $region40
    $region39: #{vhrdownnet5_forward.1} parent=5 // pred_region
      // Predicated region
      $region41: #{vhrdownnet5_forward.1} parent=39 // pred_check
        %p244 = pneg %p47
      $region42: #{vhrdownnet5_forward.1} parent=39 // pred_check_branch
        %246 = sbr.rel (%p244) target = $region44
      $region43: #{vhrdownnet5_forward.1} parent=39 // pred_region
        %p247 = scmp.lt.s32.totalorder %s20, 1
        %s248 = scalar_select %p247, %s20, 1
        %p249 = scmp.lt.s32.totalorder %s21, 0
        %s250 = scalar_select %p249, %s21, 0
        %s251 = smul.addr %s248, 24
        %s252 = sadd.s32 %s250, %s251
        %s253 = smul.addr %s252, 4
        %s254 = scalar_lea.vmem %s0, %s253
      $region44: #{vhrdownnet5_forward.1} parent=39 // pred_fallthru
        _
    $region40: #{vhrdownnet5_forward.1} parent=5 // pred_fallthru
      _
    %p255 = scmp.le.s32.totalorder 1, %s13
    %p256 = scmp.lt.s32.totalorder %s13, 3
    %p257 = pnand %p255, %p256
    %p258 = pneg %p257
    // Predicated region
    $region45: #{vhrdownnet5_forward.1} parent=5 // pred_check
      _
    $region46: #{vhrdownnet5_forward.1} parent=5 // pred_check_branch
      %260 = sbr.rel (%p257) target = $region48
    $region47: #{vhrdownnet5_forward.1} parent=5 // pred_region
      %s261 = ssub.s32 %s13, 1
      %p262 = scmp.lt.s32.totalorder %s22, 1
      %s263 = scalar_select %p262, %s22, 1
      %p264 = scmp.lt.s32.totalorder %s23, 0
      %s265 = scalar_select %p264, %s23, 0
      %s266 = smul.addr %s263, 24
      %s267 = sadd.s32 %s265, %s266
      %s268 = smul.addr %s267, 4
      %s269 = scalar_lea.vmem %s0, %s268
      %p270 = pneg %p53
      %p271 = pneg %p50
      %p272 = pneg %p74
      %p273 = pneg %p71
      %p274 = pneg %p95
      %p275 = pneg %p92
      %p276 = pneg %p116
      %p277 = pneg %p113
      %p278 = pneg %p137
      %p279 = pneg %p134
      %p280 = pneg %p158
      %p281 = pneg %p155
      %p282 = pneg %p179
      %p283 = pneg %p176
      %p284 = pneg %p207
      %p285 = pneg %p204
      %p286 = scmp.lt.s32.totalorder %s22, 1
      %s287 = scalar_select %p286, %s22, 1
      %p288 = scmp.lt.s32.totalorder %s23, 0
      %s289 = scalar_select %p288, %s23, 0
      %s290 = smul.addr %s287, 16
      %s291 = sadd.s32 %s289, %s290
      %s292 = smul.addr %s291, 8
      %s293 = scalar_lea.vmem %s7, %s292
      %p294 = scmp.lt.s32.totalorder %s22, 1
      %s295 = scalar_select %p294, %s22, 1
      %p296 = scmp.lt.s32.totalorder %s23, 0
      %s297 = scalar_select %p296, %s23, 0
      %s298 = smul.addr %s295, 24
      %s299 = sadd.s32 %s297, %s298
      %s300 = smul.addr %s299, 4
      %s301 = scalar_lea.vmem %s0, %s300
      %p302 = scmp.lt.s32.totalorder %s22, 1
      %s303 = scalar_select %p302, %s22, 1
      %p304 = scmp.lt.s32.totalorder %s23, 0
      %s305 = scalar_select %p304, %s23, 0
      %s306 = smul.addr %s303, 16
      %s307 = sadd.s32 %s305, %s306
      %s308 = smul.addr %s307, 8
      %s309 = scalar_lea.vmem %s7, %s308
      %v311 = vld [vmem:[%s1] sm:$0xf]
      %v312 = vld [vmem:[%s1 + $0x4] sm:$0xf]
      %v313 = vld [vmem:[%s1 + $0x8] sm:$0xf]
      %v314 = vld [vmem:[%s1 + $0xc] sm:$0xf]
      %v315 = vld [vmem:[%s1 + $0x10] sm:$0xf]
      %v316 = vld [vmem:[%s1 + $0x14] sm:$0xf]
      %v317 = vld [vmem:[%s1 + $0x18] sm:$0xf]
      %v318 = vld [vmem:[%s1 + $0x1c] sm:$0xf]
      %v319 = vld [vmem:[%s1 + $0x20] sm:$0xf]
      %v320 = vld [vmem:[%s1 + $0x24] sm:$0xf]
      %v321 = vld [vmem:[%s1 + $0x28] sm:$0xf]
      %v322 = vld [vmem:[%s1 + $0x2c] sm:$0xf]
      %v323 = vld [vmem:[%s1 + $0x30] sm:$0xf]
      %v324 = vld [vmem:[%s1 + $0x34] sm:$0xf]
      %v325 = vld [vmem:[%s1 + $0x38] sm:$0xf]
      %v326 = vld [vmem:[%s1 + $0x3c] sm:$0xf]
      %v327 = vld [vmem:[%s3] sm:$0xf]
      %v328 = vld [vmem:[%s3 + $0x4] sm:$0xf]
      %v329 = vld [vmem:[%s3 + $0x8] sm:$0xf]
      %v330 = vld [vmem:[%s3 + $0xc] sm:$0xf]
      %v331 = vld [vmem:[%s3 + $0x10] sm:$0xf]
      %v332 = vld [vmem:[%s3 + $0x14] sm:$0xf]
      %v333 = vld [vmem:[%s3 + $0x18] sm:$0xf]
      %v334 = vld [vmem:[%s3 + $0x1c] sm:$0xf]
      %v335 = vld [vmem:[%s5] sm:$0xff]
      %v336 = vld [vmem:[%s5 + $0x8] sm:$0xff]
      %v337 = vld [vmem:[%s5 + $0x10] sm:$0xff]
      %v338 = vld [vmem:[%s5 + $0x18] sm:$0xff]
      %v339 = vld [vmem:[%s5 + $0x20] sm:$0xff]
      %v340 = vld [vmem:[%s5 + $0x28] sm:$0xff]
      %v341 = vld [vmem:[%s5 + $0x30] sm:$0xff]
      %v342 = vld [vmem:[%s5 + $0x38] sm:$0xff]
      %v343 = vld [vmem:[%s5 + $0x40] sm:$0xff]
      %v344 = vld [vmem:[%s5 + $0x48] sm:$0xff]
      %v345 = vld [vmem:[%s5 + $0x50] sm:$0xff]
      %v346 = vld [vmem:[%s5 + $0x58] sm:$0xff]
      %v347 = vld [vmem:[%s5 + $0x60] sm:$0xff]
      %v348 = vld [vmem:[%s5 + $0x68] sm:$0xff]
      %v349 = vld [vmem:[%s5 + $0x70] sm:$0xff]
      %v350 = vld [vmem:[%s5 + $0x78] sm:$0xff]
      %v351 = vld [vmem:[%s2] sm:$0xff]
      %v352 = vld [vmem:[%s2 + $0x8] sm:$0xff]
      %v353 = vld [vmem:[%s2 + $0x10] sm:$0xff]
      %v354 = vld [vmem:[%s2 + $0x18] sm:$0xff]
      %v355 = vld [vmem:[%s2 + $0x20] sm:$0xff]
      %v356 = vld [vmem:[%s2 + $0x28] sm:$0xff]
      %v357 = vld [vmem:[%s2 + $0x30] sm:$0xff]
      %v358 = vld [vmem:[%s2 + $0x38] sm:$0xff]
      %v359 = vld [vmem:[%s2 + $0x40] sm:$0xff]
      %v360 = vld [vmem:[%s2 + $0x48] sm:$0xff]
      %v361 = vld [vmem:[%s2 + $0x50] sm:$0xff]
      %v362 = vld [vmem:[%s2 + $0x58] sm:$0xff]
      %v363 = vld [vmem:[%s2 + $0x60] sm:$0xff]
      %v364 = vld [vmem:[%s2 + $0x68] sm:$0xff]
      %v365 = vld [vmem:[%s2 + $0x70] sm:$0xff]
      %v366 = vld [vmem:[%s2 + $0x78] sm:$0xff]
      %v367 = vld [vmem:[%s4] sm:$0xff]
      %v368 = vld [vmem:[%s4 + $0x8] sm:$0xff]
      %v369 = vld [vmem:[%s4 + $0x10] sm:$0xff]
      %v370 = vld [vmem:[%s4 + $0x18] sm:$0xff]
      %v371 = vld [vmem:[%s4 + $0x20] sm:$0xff]
      %v372 = vld [vmem:[%s4 + $0x28] sm:$0xff]
      %v373 = vld [vmem:[%s4 + $0x30] sm:$0xff]
      %v374 = vld [vmem:[%s4 + $0x38] sm:$0xff]
      %v375 = vld [vmem:[%s6] sm:$0xff]
      %v376 = vld [vmem:[%s6 + $0x8] sm:$0xff]
      %v377 = vld [vmem:[%s6 + $0x10] sm:$0xff]
      %v378 = vld [vmem:[%s6 + $0x18] sm:$0xff]
      %v379 = vld [vmem:[%s6 + $0x20] sm:$0xff]
      %v380 = vld [vmem:[%s6 + $0x28] sm:$0xff]
      %v381 = vld [vmem:[%s6 + $0x30] sm:$0xff]
      %v382 = vld [vmem:[%s6 + $0x38] sm:$0xff]
      %v383 = vld [vmem:[%s6 + $0x40] sm:$0xff]
      %v384 = vld [vmem:[%s6 + $0x48] sm:$0xff]
      %v385 = vld [vmem:[%s6 + $0x50] sm:$0xff]
      %v386 = vld [vmem:[%s6 + $0x58] sm:$0xff]
      %v387 = vld [vmem:[%s6 + $0x60] sm:$0xff]
      %v388 = vld [vmem:[%s6 + $0x68] sm:$0xff]
      %v389 = vld [vmem:[%s6 + $0x70] sm:$0xff]
      %v390 = vld [vmem:[%s6 + $0x78] sm:$0xff]
      %v391 = vld [vmem:[%s301] sm:$0xf]
      %v392 = vld [vmem:[%s301 + $0x4] sm:$0xf]
      %v393 = vld [vmem:[%s301 + $0x8] sm:$0xf]
      %v394 = vld [vmem:[%s301 + $0xc] sm:$0xf]
      %v395 = vld [vmem:[%s301 + $0x10] sm:$0xf]
      %v396 = vld [vmem:[%s301 + $0x14] sm:$0xf]
      %398 = vset.pattern.permute.xlu0 0
      %399 = vperm.xlu0 %398, %v351
      %v400 = vpop.permute.xlu0 %399
      %403 = vset.pattern.permute.xlu0 0
      %404 = vperm.xlu0 %403, %v352
      %v405 = vpop.permute.xlu0 %404
      %408 = vset.pattern.permute.xlu0 0
      %409 = vperm.xlu0 %408, %v353
      %v410 = vpop.permute.xlu0 %409
      %413 = vset.pattern.permute.xlu0 0
      %414 = vperm.xlu0 %413, %v354
      %v415 = vpop.permute.xlu0 %414
      %418 = vset.pattern.permute.xlu0 0
      %419 = vperm.xlu0 %418, %v355
      %v420 = vpop.permute.xlu0 %419
      %423 = vset.pattern.permute.xlu0 0
      %424 = vperm.xlu0 %423, %v356
      %v425 = vpop.permute.xlu0 %424
      %428 = vset.pattern.permute.xlu0 0
      %429 = vperm.xlu0 %428, %v357
      %v430 = vpop.permute.xlu0 %429
      %433 = vset.pattern.permute.xlu0 0
      %434 = vperm.xlu0 %433, %v358
      %v435 = vpop.permute.xlu0 %434
      %438 = vset.pattern.permute.xlu0 0
      %439 = vperm.xlu0 %438, %v359
      %v440 = vpop.permute.xlu0 %439
      %443 = vset.pattern.permute.xlu0 0
      %444 = vperm.xlu0 %443, %v360
      %v445 = vpop.permute.xlu0 %444
      %448 = vset.pattern.permute.xlu0 0
      %449 = vperm.xlu0 %448, %v361
      %v450 = vpop.permute.xlu0 %449
      %453 = vset.pattern.permute.xlu0 0
      %454 = vperm.xlu0 %453, %v362
      %v455 = vpop.permute.xlu0 %454
      %458 = vset.pattern.permute.xlu0 0
      %459 = vperm.xlu0 %458, %v363
      %v460 = vpop.permute.xlu0 %459
      %463 = vset.pattern.permute.xlu0 0
      %464 = vperm.xlu0 %463, %v364
      %v465 = vpop.permute.xlu0 %464
      %468 = vset.pattern.permute.xlu0 0
      %469 = vperm.xlu0 %468, %v365
      %v470 = vpop.permute.xlu0 %469
      %473 = vset.pattern.permute.xlu0 0
      %474 = vperm.xlu0 %473, %v366
      %v475 = vpop.permute.xlu0 %474
      %v493 = vunpack.c.l.b16 %v311
      %v494 = vunpack.c.l.b16 %v312
      %v495 = vunpack.c.l.b16 %v313
      %v496 = vunpack.c.l.b16 %v314
      %v497 = vunpack.c.l.b16 %v315
      %v498 = vunpack.c.l.b16 %v316
      %v499 = vunpack.c.l.b16 %v317
      %v500 = vunpack.c.l.b16 %v318
      %v501 = vunpack.c.l.b16 %v319
      %v502 = vunpack.c.l.b16 %v320
      %v503 = vunpack.c.l.b16 %v321
      %v504 = vunpack.c.l.b16 %v322
      %v505 = vunpack.c.l.b16 %v323
      %v506 = vunpack.c.l.b16 %v324
      %v507 = vunpack.c.l.b16 %v325
      %v508 = vunpack.c.l.b16 %v326
      %v509 = vpack.c.b16 %v494, %v493
      %v510 = vpack.c.b16 %v496, %v495
      %v511 = vpack.c.b16 %v498, %v497
      %v512 = vpack.c.b16 %v500, %v499
      %v513 = vpack.c.b16 %v502, %v501
      %v514 = vpack.c.b16 %v504, %v503
      %v515 = vpack.c.b16 %v506, %v505
      %v516 = vpack.c.b16 %v508, %v507
      %v523 = vunpack.c.l.b16 %v391
      %v524 = vunpack.c.l.b16 %v392
      %v525 = vunpack.c.l.b16 %v393
      %v526 = vunpack.c.l.b16 %v394
      %v527 = vunpack.c.l.b16 %v395
      %v528 = vunpack.c.l.b16 %v396
      %v529 = vpack.c.b16 %v524, %v523
      %v530 = vpack.c.b16 %v526, %v525
      %v531 = vpack.c.b16 %v528, %v527
      %vm535 = vcmask 392192
      %v537 = vsel %vm535, %v509, 0
      %v540 = vsel %vm535, %v510, 0
      %v543 = vsel %vm535, %v511, 0
      %v546 = vsel %vm535, %v512, 0
      %v549 = vsel %vm535, %v513, 0
      %v552 = vsel %vm535, %v514, 0
      %v555 = vsel %vm535, %v515, 0
      %v558 = vsel %vm535, %v516, 0
      %560 = vmatprep.subr.bf16.mxu0 0
      %561 = vmatpush1.bf16.msra.mxu0 %v529
      %562 = vmatprep.subr.bf16.mxu0 0
      %563 = vmatpush1.bf16.msra.mxu0 %v530
      %564 = vmatprep.subr.bf16.mxu0 0
      %565 = vmatpush1.bf16.msra.mxu0 %v531
      %566 = vmatprep.subr.bf16.mxu0 0
      %567 = vmatpush1.bf16.msra.mxu0 0
      %568 = vmatprep.subr.bf16.mxu0 0
      %569 = vmatpush1.bf16.msra.mxu0 0
      %570 = vmatprep.subr.bf16.mxu0 0
      %571 = vmatpush1.bf16.msra.mxu0 0
      %572 = vmatprep.subr.bf16.mxu0 0
      %573 = vmatpush1.bf16.msra.mxu0 0
      %574 = vmatprep.subr.bf16.mxu0 0
      %575 = vmatpush1.bf16.msra.mxu0 0
      %576 = vmatprep.subr.bf16.mxu0 0
      %577 = vmatpush1.bf16.msra.mxu0 0
      %578 = vmatprep.subr.bf16.mxu0 0
      %579 = vmatpush1.bf16.msra.mxu0 0
      %580 = vmatprep.subr.bf16.mxu0 0
      %581 = vmatpush1.bf16.msra.mxu0 0
      %582 = vmatprep.subr.bf16.mxu0 0
      %583 = vmatpush1.bf16.msra.mxu0 0
      %584 = vmatprep.subr.bf16.mxu0 0
      %585 = vmatpush1.bf16.msra.mxu0 0
      %586 = vmatprep.subr.bf16.mxu0 0
      %587 = vmatpush1.bf16.msra.mxu0 0
      %588 = vmatprep.subr.bf16.mxu0 0
      %589 = vmatpush1.bf16.msra.mxu0 0
      %590 = vmatprep.subr.bf16.mxu0 0
      %591 = vmatpush1.bf16.msra.mxu0 0
      %592 = vmatprep.mubr.bf16.mxu0 0
      %593 = vmatmul.mubr.bf16.gmra.mrb[0].mxu0 %v537
      %v594 = vpop.f32.mrb[0].mxu0
      %v595 = vadd.f32 %v400, %v594
      %v596 = vpop.f32.mrb[0].mxu0
      %v597 = vpop.f32.mrb[0].mxu0
      %v598 = vadd.f32 %v405, %v597
      %v599 = vpop.f32.mrb[0].mxu0
      %600 = vmatprep.mubr.bf16.mxu0 0
      %601 = vmatmul.mubr.bf16.gmra.mrb[0].mxu0 %v540
      %v602 = vpop.f32.mrb[0].mxu0
      %v603 = vadd.f32 %v410, %v602
      %v604 = vpop.f32.mrb[0].mxu0
      %v605 = vpop.f32.mrb[0].mxu0
      %v606 = vadd.f32 %v415, %v605
      %v607 = vpop.f32.mrb[0].mxu0
      %608 = vmatprep.mubr.bf16.mxu0 0
      %609 = vmatmul.mubr.bf16.gmra.mrb[0].mxu0 %v543
      %v610 = vpop.f32.mrb[0].mxu0
      %v611 = vadd.f32 %v420, %v610
      %v612 = vpop.f32.mrb[0].mxu0
      %v613 = vpop.f32.mrb[0].mxu0
      %v614 = vadd.f32 %v425, %v613
      %v615 = vpop.f32.mrb[0].mxu0
      %616 = vmatprep.mubr.bf16.mxu0 0
      %617 = vmatmul.mubr.bf16.gmra.mrb[0].mxu0 %v546
      %v618 = vpop.f32.mrb[0].mxu0
      %v619 = vadd.f32 %v430, %v618
      %v620 = vpop.f32.mrb[0].mxu0
      %v621 = vpop.f32.mrb[0].mxu0
      %v622 = vadd.f32 %v435, %v621
      %v623 = vpop.f32.mrb[0].mxu0
      %624 = vmatprep.mubr.bf16.mxu0 0
      %625 = vmatmul.mubr.bf16.gmra.mrb[0].mxu0 %v549
      %v626 = vpop.f32.mrb[0].mxu0
      %v627 = vadd.f32 %v440, %v626
      %v628 = vpop.f32.mrb[0].mxu0
      %v629 = vpop.f32.mrb[0].mxu0
      %v630 = vadd.f32 %v445, %v629
      %v631 = vpop.f32.mrb[0].mxu0
      %632 = vmatprep.mubr.bf16.mxu0 0
      %633 = vmatmul.mubr.bf16.gmra.mrb[0].mxu0 %v552
      %v634 = vpop.f32.mrb[0].mxu0
      %v635 = vadd.f32 %v450, %v634
      %v636 = vpop.f32.mrb[0].mxu0
      %v637 = vpop.f32.mrb[0].mxu0
      %v638 = vadd.f32 %v455, %v637
      %v639 = vpop.f32.mrb[0].mxu0
      %640 = vmatprep.mubr.bf16.mxu0 0
      %641 = vmatmul.mubr.bf16.gmra.mrb[0].mxu0 %v555
      %v642 = vpop.f32.mrb[0].mxu0
      %v643 = vadd.f32 %v460, %v642
      %v644 = vpop.f32.mrb[0].mxu0
      %v645 = vpop.f32.mrb[0].mxu0
      %v646 = vadd.f32 %v465, %v645
      %v647 = vpop.f32.mrb[0].mxu0
      %648 = vmatprep.mubr.bf16.mxu0 0
      %649 = vmatmul.mubr.bf16.gmra.mrb[0].mxu0 %v558
      %v650 = vpop.f32.mrb[0].mxu0
      %v651 = vadd.f32 %v470, %v650
      %v652 = vpop.f32.mrb[0].mxu0
      %v653 = vpop.f32.mrb[0].mxu0
      %v654 = vadd.f32 %v475, %v653
      %v655 = vpop.f32.mrb[0].mxu0
      %656 = vdwg.mxu0
      %v657 = vmax.f32 %v595, 0.0
      %v658 = vmax.f32 %v598, 0.0
      %v659 = vmax.f32 %v603, 0.0
      %v660 = vmax.f32 %v606, 0.0
      %v661 = vmax.f32 %v611, 0.0
      %v662 = vmax.f32 %v614, 0.0
      %v663 = vmax.f32 %v619, 0.0
      %v664 = vmax.f32 %v622, 0.0
      %v665 = vmax.f32 %v627, 0.0
      %v666 = vmax.f32 %v630, 0.0
      %v667 = vmax.f32 %v635, 0.0
      %v668 = vmax.f32 %v638, 0.0
      %v669 = vmax.f32 %v643, 0.0
      %v670 = vmax.f32 %v646, 0.0
      %v671 = vmax.f32 %v651, 0.0
      %v672 = vmax.f32 %v654, 0.0
      %v673 = vpack.c.bf16 %v658, %v657
      %v674 = vpack.c.bf16 %v660, %v659
      %v675 = vpack.c.bf16 %v662, %v661
      %v676 = vpack.c.bf16 %v664, %v663
      %v677 = vpack.c.bf16 %v666, %v665
      %v678 = vpack.c.bf16 %v668, %v667
      %v679 = vpack.c.bf16 %v670, %v669
      %v680 = vpack.c.bf16 %v672, %v671
      %682 = vset.pattern.permute.xlu0 0
      %683 = vperm.xlu0 %682, %v367
      %v684 = vpop.permute.xlu0 %683
      %687 = vset.pattern.permute.xlu0 0
      %688 = vperm.xlu0 %687, %v368
      %v689 = vpop.permute.xlu0 %688
      %692 = vset.pattern.permute.xlu0 0
      %693 = vperm.xlu0 %692, %v369
      %v694 = vpop.permute.xlu0 %693
      %697 = vset.pattern.permute.xlu0 0
      %698 = vperm.xlu0 %697, %v370
      %v699 = vpop.permute.xlu0 %698
      %702 = vset.pattern.permute.xlu0 0
      %703 = vperm.xlu0 %702, %v371
      %v704 = vpop.permute.xlu0 %703
      %707 = vset.pattern.permute.xlu0 0
      %708 = vperm.xlu0 %707, %v372
      %v709 = vpop.permute.xlu0 %708
      %712 = vset.pattern.permute.xlu0 0
      %713 = vperm.xlu0 %712, %v373
      %v714 = vpop.permute.xlu0 %713
      %717 = vset.pattern.permute.xlu0 0
      %718 = vperm.xlu0 %717, %v374
      %v719 = vpop.permute.xlu0 %718
      %v729 = vunpack.c.l.b16 %v327
      %v730 = vunpack.c.l.b16 %v328
      %v731 = vunpack.c.l.b16 %v329
      %v732 = vunpack.c.l.b16 %v330
      %v733 = vunpack.c.l.b16 %v331
      %v734 = vunpack.c.l.b16 %v332
      %v735 = vunpack.c.l.b16 %v333
      %v736 = vunpack.c.l.b16 %v334
      %v737 = vpack.c.b16 %v730, %v729
      %v738 = vpack.c.b16 %v732, %v731
      %v739 = vpack.c.b16 %v734, %v733
      %v740 = vpack.c.b16 %v736, %v735
      %745 = vmatprep.subr.bf16.mxu0 0
      %746 = vmatpush1.bf16.msra.mxu0 %v673
      %747 = vmatprep.subr.bf16.mxu0 0
      %748 = vmatpush1.bf16.msra.mxu0 %v674
      %749 = vmatprep.subr.bf16.mxu0 0
      %750 = vmatpush1.bf16.msra.mxu0 %v675
      %751 = vmatprep.subr.bf16.mxu0 0
      %752 = vmatpush1.bf16.msra.mxu0 %v676
      %753 = vmatprep.subr.bf16.mxu0 0
      %754 = vmatpush1.bf16.msra.mxu0 %v677
      %755 = vmatprep.subr.bf16.mxu0 0
      %756 = vmatpush1.bf16.msra.mxu0 %v678
      %757 = vmatprep.subr.bf16.mxu0 0
      %758 = vmatpush1.bf16.msra.mxu0 %v679
      %759 = vmatprep.subr.bf16.mxu0 0
      %760 = vmatpush1.bf16.msra.mxu0 %v680
      %761 = vmatprep.subr.bf16.mxu0 0
      %762 = vmatpush1.bf16.msra.mxu0 0
      %763 = vmatprep.subr.bf16.mxu0 0
      %764 = vmatpush1.bf16.msra.mxu0 0
      %765 = vmatprep.subr.bf16.mxu0 0
      %766 = vmatpush1.bf16.msra.mxu0 0
      %767 = vmatprep.subr.bf16.mxu0 0
      %768 = vmatpush1.bf16.msra.mxu0 0
      %769 = vmatprep.subr.bf16.mxu0 0
      %770 = vmatpush1.bf16.msra.mxu0 0
      %771 = vmatprep.subr.bf16.mxu0 0
      %772 = vmatpush1.bf16.msra.mxu0 0
      %773 = vmatprep.subr.bf16.mxu0 0
      %774 = vmatpush1.bf16.msra.mxu0 0
      %775 = vmatprep.subr.bf16.mxu0 0
      %776 = vmatpush1.bf16.msra.mxu0 0
      %777 = vmatprep.mubr.bf16.mxu0 0
      %778 = vmatmul.mubr.bf16.gmra.mrb[0].mxu0 %v737
      %v779 = vpop.f32.mrb[0].mxu0
      %v780 = vadd.f32 %v684, %v779
      %v781 = vpop.f32.mrb[0].mxu0
      %v782 = vpop.f32.mrb[0].mxu0
      %v783 = vadd.f32 %v689, %v782
      %v784 = vpop.f32.mrb[0].mxu0
      %785 = vmatprep.mubr.bf16.mxu0 0
      %786 = vmatmul.mubr.bf16.gmra.mrb[0].mxu0 %v738
      %v787 = vpop.f32.mrb[0].mxu0
      %v788 = vadd.f32 %v694, %v787
      %v789 = vpop.f32.mrb[0].mxu0
      %v790 = vpop.f32.mrb[0].mxu0
      %v791 = vadd.f32 %v699, %v790
      %v792 = vpop.f32.mrb[0].mxu0
      %793 = vmatprep.mubr.bf16.mxu0 0
      %794 = vmatmul.mubr.bf16.gmra.mrb[0].mxu0 %v739
      %v795 = vpop.f32.mrb[0].mxu0
      %v796 = vadd.f32 %v704, %v795
      %v797 = vpop.f32.mrb[0].mxu0
      %v798 = vpop.f32.mrb[0].mxu0
      %v799 = vadd.f32 %v709, %v798
      %v800 = vpop.f32.mrb[0].mxu0
      %801 = vmatprep.mubr.bf16.mxu0 0
      %802 = vmatmul.mubr.bf16.gmra.mrb[0].mxu0 %v740
      %v803 = vpop.f32.mrb[0].mxu0
      %v804 = vadd.f32 %v714, %v803
      %v805 = vpop.f32.mrb[0].mxu0
      %v806 = vpop.f32.mrb[0].mxu0
      %v807 = vadd.f32 %v719, %v806
      %v808 = vpop.f32.mrb[0].mxu0
      %809 = vdwg.mxu0
      %v810 = vmax.f32 %v780, 0.0
      %v811 = vmax.f32 %v783, 0.0
      %v812 = vmax.f32 %v788, 0.0
      %v813 = vmax.f32 %v791, 0.0
      %v814 = vmax.f32 %v796, 0.0
      %v815 = vmax.f32 %v799, 0.0
      %v816 = vmax.f32 %v804, 0.0
      %v817 = vmax.f32 %v807, 0.0
      %v818 = vpack.c.bf16 %v811, %v810
      %v819 = vpack.c.bf16 %v813, %v812
      %v820 = vpack.c.bf16 %v815, %v814
      %v821 = vpack.c.bf16 %v817, %v816
      %822 = vst [vmem:[#allocation2] sm:$0xff] %v818
      %823 = vst [vmem:[#allocation2 + $0x8] sm:$0xff] %v819
      %824 = vst [vmem:[#allocation2 + $0x10] sm:$0xff] %v820
      %825 = vst [vmem:[#allocation2 + $0x18] sm:$0xff] %v821
      %s826 = scalar_lea.vmem %s301, 24
      %v827 = vld [vmem:[%s826] sm:$0xf]
      %v828 = vld [vmem:[%s826 + $0x4] sm:$0xf]
      %v829 = vld [vmem:[%s826 + $0x8] sm:$0xf]
      %v830 = vld [vmem:[%s826 + $0xc] sm:$0xf]
      %v831 = vld [vmem:[%s826 + $0x10] sm:$0xf]
      %v832 = vld [vmem:[%s826 + $0x14] sm:$0xf]
      %v839 = vunpack.c.l.b16 %v827
      %v840 = vunpack.c.l.b16 %v828
      %v841 = vunpack.c.l.b16 %v829
      %v842 = vunpack.c.l.b16 %v830
      %v843 = vunpack.c.l.b16 %v831
      %v844 = vunpack.c.l.b16 %v832
      %v845 = vpack.c.b16 %v840, %v839
      %v846 = vpack.c.b16 %v842, %v841
      %v847 = vpack.c.b16 %v844, %v843
      %851 = vmatprep.subr.bf16.mxu0 0
      %852 = vmatpush1.bf16.msra.mxu0 %v845
      %853 = vmatprep.subr.bf16.mxu0 0
      %854 = vmatpush1.bf16.msra.mxu0 %v846
      %855 = vmatprep.subr.bf16.mxu0 0
      %856 = vmatpush1.bf16.msra.mxu0 %v847
      %857 = vmatprep.subr.bf16.mxu0 0
      %858 = vmatpush1.bf16.msra.mxu0 0
      %859 = vmatprep.subr.bf16.mxu0 0
      %860 = vmatpush1.bf16.msra.mxu0 0
      %861 = vmatprep.subr.bf16.mxu0 0
      %862 = vmatpush1.bf16.msra.mxu0 0
      %863 = vmatprep.subr.bf16.mxu0 0
      %864 = vmatpush1.bf16.msra.mxu0 0
      %865 = vmatprep.subr.bf16.mxu0 0
      %866 = vmatpush1.bf16.msra.mxu0 0
      %867 = vmatprep.subr.bf16.mxu0 0
      %868 = vmatpush1.bf16.msra.mxu0 0
      %869 = vmatprep.subr.bf16.mxu0 0
      %870 = vmatpush1.bf16.msra.mxu0 0
      %871 = vmatprep.subr.bf16.mxu0 0
      %872 = vmatpush1.bf16.msra.mxu0 0
      %873 = vmatprep.subr.bf16.mxu0 0
      %874 = vmatpush1.bf16.msra.mxu0 0
      %875 = vmatprep.subr.bf16.mxu0 0
      %876 = vmatpush1.bf16.msra.mxu0 0
      %877 = vmatprep.subr.bf16.mxu0 0
      %878 = vmatpush1.bf16.msra.mxu0 0
      %879 = vmatprep.subr.bf16.mxu0 0
      %880 = vmatpush1.bf16.msra.mxu0 0
      %881 = vmatprep.subr.bf16.mxu0 0
      %882 = vmatpush1.bf16.msra.mxu0 0
      %883 = vmatprep.mubr.bf16.mxu0 0
      %884 = vmatmul.mubr.bf16.gmra.mrb[0].mxu0 %v537
      %v885 = vpop.f32.mrb[0].mxu0
      %v886 = vadd.f32 %v400, %v885
      %v887 = vpop.f32.mrb[0].mxu0
      %v888 = vpop.f32.mrb[0].mxu0
      %v889 = vadd.f32 %v405, %v888
      %v890 = vpop.f32.mrb[0].mxu0
      %891 = vmatprep.mubr.bf16.mxu0 0
      %892 = vmatmul.mubr.bf16.gmra.mrb[0].mxu0 %v540
      %v893 = vpop.f32.mrb[0].mxu0
      %v894 = vadd.f32 %v410, %v893
      %v895 = vpop.f32.mrb[0].mxu0
      %v896 = vpop.f32.mrb[0].mxu0
      %v897 = vadd.f32 %v415, %v896
      %v898 = vpop.f32.mrb[0].mxu0
      %899 = vmatprep.mubr.bf16.mxu0 0
      %900 = vmatmul.mubr.bf16.gmra.mrb[0].mxu0 %v543
      %v901 = vpop.f32.mrb[0].mxu0
      %v902 = vadd.f32 %v420, %v901
      %v903 = vpop.f32.mrb[0].mxu0
      %v904 = vpop.f32.mrb[0].mxu0
      %v905 = vadd.f32 %v425, %v904
      %v906 = vpop.f32.mrb[0].mxu0
      %907 = vmatprep.mubr.bf16.mxu0 0
      %908 = vmatmul.mubr.bf16.gmra.mrb[0].mxu0 %v546
      %v909 = vpop.f32.mrb[0].mxu0
      %v910 = vadd.f32 %v430, %v909
      %v911 = vpop.f32.mrb[0].mxu0
      %v912 = vpop.f32.mrb[0].mxu0
      %v913 = vadd.f32 %v435, %v912
      %v914 = vpop.f32.mrb[0].mxu0
      %915 = vmatprep.mubr.bf16.mxu0 0
      %916 = vmatmul.mubr.bf16.gmra.mrb[0].mxu0 %v549
      %v917 = vpop.f32.mrb[0].mxu0
      %v918 = vadd.f32 %v440, %v917
      %v919 = vpop.f32.mrb[0].mxu0
      %v920 = vpop.f32.mrb[0].mxu0
      %v921 = vadd.f32 %v445, %v920
      %v922 = vpop.f32.mrb[0].mxu0
      %923 = vmatprep.mubr.bf16.mxu0 0
      %924 = vmatmul.mubr.bf16.gmra.mrb[0].mxu0 %v552
      %v925 = vpop.f32.mrb[0].mxu0
      %v926 = vadd.f32 %v450, %v925
      %v927 = vpop.f32.mrb[0].mxu0
      %v928 = vpop.f32.mrb[0].mxu0
      %v929 = vadd.f32 %v455, %v928
      %v930 = vpop.f32.mrb[0].mxu0
      %931 = vmatprep.mubr.bf16.mxu0 0
      %932 = vmatmul.mubr.bf16.gmra.mrb[0].mxu0 %v555
      %v933 = vpop.f32.mrb[0].mxu0
      %v934 = vadd.f32 %v460, %v933
      %v935 = vpop.f32.mrb[0].mxu0
      %v936 = vpop.f32.mrb[0].mxu0
      %v937 = vadd.f32 %v465, %v936
      %v938 = vpop.f32.mrb[0].mxu0
      %939 = vmatprep.mubr.bf16.mxu0 0
      %940 = vmatmul.mubr.bf16.gmra.mrb[0].mxu0 %v558
      %v941 = vpop.f32.mrb[0].mxu0
      %v942 = vadd.f32 %v470, %v941
      %v943 = vpop.f32.mrb[0].mxu0
      %v944 = vpop.f32.mrb[0].mxu0
      %v945 = vadd.f32 %v475, %v944
      %v946 = vpop.f32.mrb[0].mxu0
      %947 = vdwg.mxu0
      %v948 = vmax.f32 %v886, 0.0
      %v949 = vmax.f32 %v889, 0.0
      %v950 = vmax.f32 %v894, 0.0
      %v951 = vmax.f32 %v897, 0.0
      %v952 = vmax.f32 %v902, 0.0
      %v953 = vmax.f32 %v905, 0.0
      %v954 = vmax.f32 %v910, 0.0
      %v955 = vmax.f32 %v913, 0.0
      %v956 = vmax.f32 %v918, 0.0
      %v957 = vmax.f32 %v921, 0.0
      %v958 = vmax.f32 %v926, 0.0
      %v959 = vmax.f32 %v929, 0.0
      %v960 = vmax.f32 %v934, 0.0
      %v961 = vmax.f32 %v937, 0.0
      %v962 = vmax.f32 %v942, 0.0
      %v963 = vmax.f32 %v945, 0.0
      %v964 = vpack.c.bf16 %v949, %v948
      %v965 = vpack.c.bf16 %v951, %v950
      %v966 = vpack.c.bf16 %v953, %v952
      %v967 = vpack.c.bf16 %v955, %v954
      %v968 = vpack.c.bf16 %v957, %v956
      %v969 = vpack.c.bf16 %v959, %v958
      %v970 = vpack.c.bf16 %v961, %v960
      %v971 = vpack.c.bf16 %v963, %v962
      %972 = vmatprep.subr.bf16.mxu0 0
      %973 = vmatpush1.bf16.msra.mxu0 %v964
      %974 = vmatprep.subr.bf16.mxu0 0
      %975 = vmatpush1.bf16.msra.mxu0 %v965
      %976 = vmatprep.subr.bf16.mxu0 0
      %977 = vmatpush1.bf16.msra.mxu0 %v966
      %978 = vmatprep.subr.bf16.mxu0 0
      %979 = vmatpush1.bf16.msra.mxu0 %v967
      %980 = vmatprep.subr.bf16.mxu0 0
      %981 = vmatpush1.bf16.msra.mxu0 %v968
      %982 = vmatprep.subr.bf16.mxu0 0
      %983 = vmatpush1.bf16.msra.mxu0 %v969
      %984 = vmatprep.subr.bf16.mxu0 0
      %985 = vmatpush1.bf16.msra.mxu0 %v970
      %986 = vmatprep.subr.bf16.mxu0 0
      %987 = vmatpush1.bf16.msra.mxu0 %v971
      %988 = vmatprep.subr.bf16.mxu0 0
      %989 = vmatpush1.bf16.msra.mxu0 0
      %990 = vmatprep.subr.bf16.mxu0 0
      %991 = vmatpush1.bf16.msra.mxu0 0
      %992 = vmatprep.subr.bf16.mxu0 0
      %993 = vmatpush1.bf16.msra.mxu0 0
      %994 = vmatprep.subr.bf16.mxu0 0
      %995 = vmatpush1.bf16.msra.mxu0 0
      %996 = vmatprep.subr.bf16.mxu0 0
      %997 = vmatpush1.bf16.msra.mxu0 0
      %998 = vmatprep.subr.bf16.mxu0 0
      %999 = vmatpush1.bf16.msra.mxu0 0
      %1000 = vmatprep.subr.bf16.mxu0 0
      %1001 = vmatpush1.bf16.msra.mxu0 0
      %1002 = vmatprep.subr.bf16.mxu0 0
      %1003 = vmatpush1.bf16.msra.mxu0 0
      %1004 = vmatprep.mubr.bf16.mxu0 0
      %1005 = vmatmul.mubr.bf16.gmra.mrb[0].mxu0 %v737
      %v1006 = vpop.f32.mrb[0].mxu0
      %v1007 = vadd.f32 %v684, %v1006
      %v1008 = vpop.f32.mrb[0].mxu0
      %v1009 = vpop.f32.mrb[0].mxu0
      %v1010 = vadd.f32 %v689, %v1009
      %v1011 = vpop.f32.mrb[0].mxu0
      %1012 = vmatprep.mubr.bf16.mxu0 0
      %1013 = vmatmul.mubr.bf16.gmra.mrb[0].mxu0 %v738
      %v1014 = vpop.f32.mrb[0].mxu0
      %v1015 = vadd.f32 %v694, %v1014
      %v1016 = vpop.f32.mrb[0].mxu0
      %v1017 = vpop.f32.mrb[0].mxu0
      %v1018 = vadd.f32 %v699, %v1017
      %v1019 = vpop.f32.mrb[0].mxu0
      %1020 = vmatprep.mubr.bf16.mxu0 0
      %1021 = vmatmul.mubr.bf16.gmra.mrb[0].mxu0 %v739
      %v1022 = vpop.f32.mrb[0].mxu0
      %v1023 = vadd.f32 %v704, %v1022
      %v1024 = vpop.f32.mrb[0].mxu0
      %v1025 = vpop.f32.mrb[0].mxu0
      %v1026 = vadd.f32 %v709, %v1025
      %v1027 = vpop.f32.mrb[0].mxu0
      %1028 = vmatprep.mubr.bf16.mxu0 0
      %1029 = vmatmul.mubr.bf16.gmra.mrb[0].mxu0 %v740
      %v1030 = vpop.f32.mrb[0].mxu0
      %v1031 = vadd.f32 %v714, %v1030
      %v1032 = vpop.f32.mrb[0].mxu0
      %v1033 = vpop.f32.mrb[0].mxu0
      %v1034 = vadd.f32 %v719, %v1033
      %v1035 = vpop.f32.mrb[0].mxu0
      %1036 = vdwg.mxu0
      %v1037 = vmax.f32 %v1007, 0.0
      %v1038 = vmax.f32 %v1010, 0.0
      %v1039 = vmax.f32 %v1015, 0.0
      %v1040 = vmax.f32 %v1018, 0.0
      %v1041 = vmax.f32 %v1023, 0.0
      %v1042 = vmax.f32 %v1026, 0.0
      %v1043 = vmax.f32 %v1031, 0.0
      %v1044 = vmax.f32 %v1034, 0.0
      %v1045 = vpack.c.bf16 %v1038, %v1037
      %v1046 = vpack.c.bf16 %v1040, %v1039
      %v1047 = vpack.c.bf16 %v1042, %v1041
      %v1048 = vpack.c.bf16 %v1044, %v1043
      %1049 = vst [vmem:[#allocation2 + $0x20] sm:$0xff] %v1045
      %1050 = vst [vmem:[#allocation2 + $0x28] sm:$0xff] %v1046
      %1051 = vst [vmem:[#allocation2 + $0x30] sm:$0xff] %v1047
      %1052 = vst [vmem:[#allocation2 + $0x38] sm:$0xff] %v1048
      %s1053 = scalar_lea.vmem %s301, 48
      %v1054 = vld [vmem:[%s1053] sm:$0xf]
      %v1055 = vld [vmem:[%s1053 + $0x4] sm:$0xf]
      %v1056 = vld [vmem:[%s1053 + $0x8] sm:$0xf]
      %v1057 = vld [vmem:[%s1053 + $0xc] sm:$0xf]
      %v1058 = vld [vmem:[%s1053 + $0x10] sm:$0xf]
      %v1059 = vld [vmem:[%s1053 + $0x14] sm:$0xf]
      %v1066 = vunpack.c.l.b16 %v1054
      %v1067 = vunpack.c.l.b16 %v1055
      %v1068 = vunpack.c.l.b16 %v1056
      %v1069 = vunpack.c.l.b16 %v1057
      %v1070 = vunpack.c.l.b16 %v1058
      %v1071 = vunpack.c.l.b16 %v1059
      %v1072 = vpack.c.b16 %v1067, %v1066
      %v1073 = vpack.c.b16 %v1069, %v1068
      %v1074 = vpack.c.b16 %v1071, %v1070
      %1078 = vmatprep.subr.bf16.mxu0 0
      %1079 = vmatpush1.bf16.msra.mxu0 %v1072
      %1080 = vmatprep.subr.bf16.mxu0 0
      %1081 = vmatpush1.bf16.msra.mxu0 %v1073
      %1082 = vmatprep.subr.bf16.mxu0 0
      %1083 = vmatpush1.bf16.msra.mxu0 %v1074
      %1084 = vmatprep.subr.bf16.mxu0 0
      %1085 = vmatpush1.bf16.msra.mxu0 0
      %1086 = vmatprep.subr.bf16.mxu0 0
      %1087 = vmatpush1.bf16.msra.mxu0 0
      %1088 = vmatprep.subr.bf16.mxu0 0
      %1089 = vmatpush1.bf16.msra.mxu0 0
      %1090 = vmatprep.subr.bf16.mxu0 0
      %1091 = vmatpush1.bf16.msra.mxu0 0
      %1092 = vmatprep.subr.bf16.mxu0 0
      %1093 = vmatpush1.bf16.msra.mxu0 0
      %1094 = vmatprep.subr.bf16.mxu0 0
      %1095 = vmatpush1.bf16.msra.mxu0 0
      %1096 = vmatprep.subr.bf16.mxu0 0
      %1097 = vmatpush1.bf16.msra.mxu0 0
      %1098 = vmatprep.subr.bf16.mxu0 0
      %1099 = vmatpush1.bf16.msra.mxu0 0
      %1100 = vmatprep.subr.bf16.mxu0 0
      %1101 = vmatpush1.bf16.msra.mxu0 0
      %1102 = vmatprep.subr.bf16.mxu0 0
      %1103 = vmatpush1.bf16.msra.mxu0 0
      %1104 = vmatprep.subr.bf16.mxu0 0
      %1105 = vmatpush1.bf16.msra.mxu0 0
      %1106 = vmatprep.subr.bf16.mxu0 0
      %1107 = vmatpush1.bf16.msra.mxu0 0
      %1108 = vmatprep.subr.bf16.mxu0 0
      %1109 = vmatpush1.bf16.msra.mxu0 0
      %1110 = vmatprep.mubr.bf16.mxu0 0
      %1111 = vmatmul.mubr.bf16.gmra.mrb[0].mxu0 %v537
      %v1112 = vpop.f32.mrb[0].mxu0
      %v1113 = vadd.f32 %v400, %v1112
      %v1114 = vpop.f32.mrb[0].mxu0
      %v1115 = vpop.f32.mrb[0].mxu0
      %v1116 = vadd.f32 %v405, %v1115
      %v1117 = vpop.f32.mrb[0].mxu0
      %1118 = vmatprep.mubr.bf16.mxu0 0
      %1119 = vmatmul.mubr.bf16.gmra.mrb[0].mxu0 %v540
      %v1120 = vpop.f32.mrb[0].mxu0
      %v1121 = vadd.f32 %v410, %v1120
      %v1122 = vpop.f32.mrb[0].mxu0
      %v1123 = vpop.f32.mrb[0].mxu0
      %v1124 = vadd.f32 %v415, %v1123
      %v1125 = vpop.f32.mrb[0].mxu0
      %1126 = vmatprep.mubr.bf16.mxu0 0
      %1127 = vmatmul.mubr.bf16.gmra.mrb[0].mxu0 %v543
      %v1128 = vpop.f32.mrb[0].mxu0
      %v1129 = vadd.f32 %v420, %v1128
      %v1130 = vpop.f32.mrb[0].mxu0
      %v1131 = vpop.f32.mrb[0].mxu0
      %v1132 = vadd.f32 %v425, %v1131
      %v1133 = vpop.f32.mrb[0].mxu0
      %1134 = vmatprep.mubr.bf16.mxu0 0
      %1135 = vmatmul.mubr.bf16.gmra.mrb[0].mxu0 %v546
      %v1136 = vpop.f32.mrb[0].mxu0
      %v1137 = vadd.f32 %v430, %v1136
      %v1138 = vpop.f32.mrb[0].mxu0
      %v1139 = vpop.f32.mrb[0].mxu0
      %v1140 = vadd.f32 %v435, %v1139
      %v1141 = vpop.f32.mrb[0].mxu0
      %1142 = vmatprep.mubr.bf16.mxu0 0
      %1143 = vmatmul.mubr.bf16.gmra.mrb[0].mxu0 %v549
      %v1144 = vpop.f32.mrb[0].mxu0
      %v1145 = vadd.f32 %v440, %v1144
      %v1146 = vpop.f32.mrb[0].mxu0
      %v1147 = vpop.f32.mrb[0].mxu0
      %v1148 = vadd.f32 %v445, %v1147
      %v1149 = vpop.f32.mrb[0].mxu0
      %1150 = vmatprep.mubr.bf16.mxu0 0
      %1151 = vmatmul.mubr.bf16.gmra.mrb[0].mxu0 %v552
      %v1152 = vpop.f32.mrb[0].mxu0
      %v1153 = vadd.f32 %v450, %v1152
      %v1154 = vpop.f32.mrb[0].mxu0
      %v1155 = vpop.f32.mrb[0].mxu0
      %v1156 = vadd.f32 %v455, %v1155
      %v1157 = vpop.f32.mrb[0].mxu0
      %1158 = vmatprep.mubr.bf16.mxu0 0
      %1159 = vmatmul.mubr.bf16.gmra.mrb[0].mxu0 %v555
      %v1160 = vpop.f32.mrb[0].mxu0
      %v1161 = vadd.f32 %v460, %v1160
      %v1162 = vpop.f32.mrb[0].mxu0
      %v1163 = vpop.f32.mrb[0].mxu0
      %v1164 = vadd.f32 %v465, %v1163
      %v1165 = vpop.f32.mrb[0].mxu0
      %1166 = vmatprep.mubr.bf16.mxu0 0
      %1167 = vmatmul.mubr.bf16.gmra.mrb[0].mxu0 %v558
      %v1168 = vpop.f32.mrb[0].mxu0
      %v1169 = vadd.f32 %v470, %v1168
      %v1170 = vpop.f32.mrb[0].mxu0
      %v1171 = vpop.f32.mrb[0].mxu0
      %v1172 = vadd.f32 %v475, %v1171
      %v1173 = vpop.f32.mrb[0].mxu0
      %1174 = vdwg.mxu0
      %v1175 = vmax.f32 %v1113, 0.0
      %v1176 = vmax.f32 %v1116, 0.0
      %v1177 = vmax.f32 %v1121, 0.0
      %v1178 = vmax.f32 %v1124, 0.0
      %v1179 = vmax.f32 %v1129, 0.0
      %v1180 = vmax.f32 %v1132, 0.0
      %v1181 = vmax.f32 %v1137, 0.0
      %v1182 = vmax.f32 %v1140, 0.0
      %v1183 = vmax.f32 %v1145, 0.0
      %v1184 = vmax.f32 %v1148, 0.0
      %v1185 = vmax.f32 %v1153, 0.0
      %v1186 = vmax.f32 %v1156, 0.0
      %v1187 = vmax.f32 %v1161, 0.0
      %v1188 = vmax.f32 %v1164, 0.0
      %v1189 = vmax.f32 %v1169, 0.0
      %v1190 = vmax.f32 %v1172, 0.0
      %v1191 = vpack.c.bf16 %v1176, %v1175
      %v1192 = vpack.c.bf16 %v1178, %v1177
      %v1193 = vpack.c.bf16 %v1180, %v1179
      %v1194 = vpack.c.bf16 %v1182, %v1181
      %v1195 = vpack.c.bf16 %v1184, %v1183
      %v1196 = vpack.c.bf16 %v1186, %v1185
      %v1197 = vpack.c.bf16 %v1188, %v1187
      %v1198 = vpack.c.bf16 %v1190, %v1189
      %1199 = vmatprep.subr.bf16.mxu0 0
      %1200 = vmatpush1.bf16.msra.mxu0 %v1191
      %1201 = vmatprep.subr.bf16.mxu0 0
      %1202 = vmatpush1.bf16.msra.mxu0 %v1192
      %1203 = vmatprep.subr.bf16.mxu0 0
      %1204 = vmatpush1.bf16.msra.mxu0 %v1193
      %1205 = vmatprep.subr.bf16.mxu0 0
      %1206 = vmatpush1.bf16.msra.mxu0 %v1194
      %1207 = vmatprep.subr.bf16.mxu0 0
      %1208 = vmatpush1.bf16.msra.mxu0 %v1195
      %1209 = vmatprep.subr.bf16.mxu0 0
      %1210 = vmatpush1.bf16.msra.mxu0 %v1196
      %1211 = vmatprep.subr.bf16.mxu0 0
      %1212 = vmatpush1.bf16.msra.mxu0 %v1197
      %1213 = vmatprep.subr.bf16.mxu0 0
      %1214 = vmatpush1.bf16.msra.mxu0 %v1198
      %1215 = vmatprep.subr.bf16.mxu0 0
      %1216 = vmatpush1.bf16.msra.mxu0 0
      %1217 = vmatprep.subr.bf16.mxu0 0
      %1218 = vmatpush1.bf16.msra.mxu0 0
      %1219 = vmatprep.subr.bf16.mxu0 0
      %1220 = vmatpush1.bf16.msra.mxu0 0
      %1221 = vmatprep.subr.bf16.mxu0 0
      %1222 = vmatpush1.bf16.msra.mxu0 0
      %1223 = vmatprep.subr.bf16.mxu0 0
      %1224 = vmatpush1.bf16.msra.mxu0 0
      %1225 = vmatprep.subr.bf16.mxu0 0
      %1226 = vmatpush1.bf16.msra.mxu0 0
      %1227 = vmatprep.subr.bf16.mxu0 0
      %1228 = vmatpush1.bf16.msra.mxu0 0
      %1229 = vmatprep.subr.bf16.mxu0 0
      %1230 = vmatpush1.bf16.msra.mxu0 0
      %1231 = vmatprep.mubr.bf16.mxu0 0
      %1232 = vmatmul.mubr.bf16.gmra.mrb[0].mxu0 %v737
      %v1233 = vpop.f32.mrb[0].mxu0
      %v1234 = vadd.f32 %v684, %v1233
      %v1235 = vpop.f32.mrb[0].mxu0
      %v1236 = vpop.f32.mrb[0].mxu0
      %v1237 = vadd.f32 %v689, %v1236
      %v1238 = vpop.f32.mrb[0].mxu0
      %1239 = vmatprep.mubr.bf16.mxu0 0
      %1240 = vmatmul.mubr.bf16.gmra.mrb[0].mxu0 %v738
      %v1241 = vpop.f32.mrb[0].mxu0
      %v1242 = vadd.f32 %v694, %v1241
      %v1243 = vpop.f32.mrb[0].mxu0
      %v1244 = vpop.f32.mrb[0].mxu0
      %v1245 = vadd.f32 %v699, %v1244
      %v1246 = vpop.f32.mrb[0].mxu0
      %1247 = vmatprep.mubr.bf16.mxu0 0
      %1248 = vmatmul.mubr.bf16.gmra.mrb[0].mxu0 %v739
      %v1249 = vpop.f32.mrb[0].mxu0
      %v1250 = vadd.f32 %v704, %v1249
      %v1251 = vpop.f32.mrb[0].mxu0
      %v1252 = vpop.f32.mrb[0].mxu0
      %v1253 = vadd.f32 %v709, %v1252
      %v1254 = vpop.f32.mrb[0].mxu0
      %1255 = vmatprep.mubr.bf16.mxu0 0
      %1256 = vmatmul.mubr.bf16.gmra.mrb[0].mxu0 %v740
      %v1257 = vpop.f32.mrb[0].mxu0
      %v1258 = vadd.f32 %v714, %v1257
      %v1259 = vpop.f32.mrb[0].mxu0
      %v1260 = vpop.f32.mrb[0].mxu0
      %v1261 = vadd.f32 %v719, %v1260
      %v1262 = vpop.f32.mrb[0].mxu0
      %1263 = vdwg.mxu0
      %v1264 = vmax.f32 %v1234, 0.0
      %v1265 = vmax.f32 %v1237, 0.0
      %v1266 = vmax.f32 %v1242, 0.0
      %v1267 = vmax.f32 %v1245, 0.0
      %v1268 = vmax.f32 %v1250, 0.0
      %v1269 = vmax.f32 %v1253, 0.0
      %v1270 = vmax.f32 %v1258, 0.0
      %v1271 = vmax.f32 %v1261, 0.0
      %v1272 = vpack.c.bf16 %v1265, %v1264
      %v1273 = vpack.c.bf16 %v1267, %v1266
      %v1274 = vpack.c.bf16 %v1269, %v1268
      %v1275 = vpack.c.bf16 %v1271, %v1270
      %1276 = vst [vmem:[#allocation2 + $0x40] sm:$0xff] %v1272
      %1277 = vst [vmem:[#allocation2 + $0x48] sm:$0xff] %v1273
      %1278 = vst [vmem:[#allocation2 + $0x50] sm:$0xff] %v1274
      %1279 = vst [vmem:[#allocation2 + $0x58] sm:$0xff] %v1275
      %s1280 = scalar_lea.vmem %s301, 72
      %v1281 = vld [vmem:[%s1280] sm:$0xf]
      %v1282 = vld [vmem:[%s1280 + $0x4] sm:$0xf]
      %v1283 = vld [vmem:[%s1280 + $0x8] sm:$0xf]
      %v1284 = vld [vmem:[%s1280 + $0xc] sm:$0xf]
      %v1285 = vld [vmem:[%s1280 + $0x10] sm:$0xf]
      %v1286 = vld [vmem:[%s1280 + $0x14] sm:$0xf]
      %v1293 = vunpack.c.l.b16 %v1281
      %v1294 = vunpack.c.l.b16 %v1282
      %v1295 = vunpack.c.l.b16 %v1283
      %v1296 = vunpack.c.l.b16 %v1284
      %v1297 = vunpack.c.l.b16 %v1285
      %v1298 = vunpack.c.l.b16 %v1286
      %v1299 = vpack.c.b16 %v1294, %v1293
      %v1300 = vpack.c.b16 %v1296, %v1295
      %v1301 = vpack.c.b16 %v1298, %v1297
      %1305 = vmatprep.subr.bf16.mxu0 0
      %1306 = vmatpush1.bf16.msra.mxu0 %v1299
      %1307 = vmatprep.subr.bf16.mxu0 0
      %1308 = vmatpush1.bf16.msra.mxu0 %v1300
      %1309 = vmatprep.subr.bf16.mxu0 0
      %1310 = vmatpush1.bf16.msra.mxu0 %v1301
      %1311 = vmatprep.subr.bf16.mxu0 0
      %1312 = vmatpush1.bf16.msra.mxu0 0
      %1313 = vmatprep.subr.bf16.mxu0 0
      %1314 = vmatpush1.bf16.msra.mxu0 0
      %1315 = vmatprep.subr.bf16.mxu0 0
      %1316 = vmatpush1.bf16.msra.mxu0 0
      %1317 = vmatprep.subr.bf16.mxu0 0
      %1318 = vmatpush1.bf16.msra.mxu0 0
      %1319 = vmatprep.subr.bf16.mxu0 0
      %1320 = vmatpush1.bf16.msra.mxu0 0
      %1321 = vmatprep.subr.bf16.mxu0 0
      %1322 = vmatpush1.bf16.msra.mxu0 0
      %1323 = vmatprep.subr.bf16.mxu0 0
      %1324 = vmatpush1.bf16.msra.mxu0 0
      %1325 = vmatprep.subr.bf16.mxu0 0
      %1326 = vmatpush1.bf16.msra.mxu0 0
      %1327 = vmatprep.subr.bf16.mxu0 0
      %1328 = vmatpush1.bf16.msra.mxu0 0
      %1329 = vmatprep.subr.bf16.mxu0 0
      %1330 = vmatpush1.bf16.msra.mxu0 0
      %1331 = vmatprep.subr.bf16.mxu0 0
      %1332 = vmatpush1.bf16.msra.mxu0 0
      %1333 = vmatprep.subr.bf16.mxu0 0
      %1334 = vmatpush1.bf16.msra.mxu0 0
      %1335 = vmatprep.subr.bf16.mxu0 0
      %1336 = vmatpush1.bf16.msra.mxu0 0
      %1337 = vmatprep.mubr.bf16.mxu0 0
      %1338 = vmatmul.mubr.bf16.gmra.mrb[0].mxu0 %v537
      %v1339 = vpop.f32.mrb[0].mxu0
      %v1340 = vadd.f32 %v400, %v1339
      %v1341 = vpop.f32.mrb[0].mxu0
      %v1342 = vpop.f32.mrb[0].mxu0
      %v1343 = vadd.f32 %v405, %v1342
      %v1344 = vpop.f32.mrb[0].mxu0
      %1345 = vmatprep.mubr.bf16.mxu0 0
      %1346 = vmatmul.mubr.bf16.gmra.mrb[0].mxu0 %v540
      %v1347 = vpop.f32.mrb[0].mxu0
      %v1348 = vadd.f32 %v410, %v1347
      %v1349 = vpop.f32.mrb[0].mxu0
      %v1350 = vpop.f32.mrb[0].mxu0
      %v1351 = vadd.f32 %v415, %v1350
      %v1352 = vpop.f32.mrb[0].mxu0
      %1353 = vmatprep.mubr.bf16.mxu0 0
      %1354 = vmatmul.mubr.bf16.gmra.mrb[0].mxu0 %v543
      %v1355 = vpop.f32.mrb[0].mxu0
      %v1356 = vadd.f32 %v420, %v1355
      %v1357 = vpop.f32.mrb[0].mxu0
      %v1358 = vpop.f32.mrb[0].mxu0
      %v1359 = vadd.f32 %v425, %v1358
      %v1360 = vpop.f32.mrb[0].mxu0
      %1361 = vmatprep.mubr.bf16.mxu0 0
      %1362 = vmatmul.mubr.bf16.gmra.mrb[0].mxu0 %v546
      %v1363 = vpop.f32.mrb[0].mxu0
      %v1364 = vadd.f32 %v430, %v1363
      %v1365 = vpop.f32.mrb[0].mxu0
      %v1366 = vpop.f32.mrb[0].mxu0
      %v1367 = vadd.f32 %v435, %v1366
      %v1368 = vpop.f32.mrb[0].mxu0
      %1369 = vmatprep.mubr.bf16.mxu0 0
      %1370 = vmatmul.mubr.bf16.gmra.mrb[0].mxu0 %v549
      %v1371 = vpop.f32.mrb[0].mxu0
      %v1372 = vadd.f32 %v440, %v1371
      %v1373 = vpop.f32.mrb[0].mxu0
      %v1374 = vpop.f32.mrb[0].mxu0
      %v1375 = vadd.f32 %v445, %v1374
      %v1376 = vpop.f32.mrb[0].mxu0
      %1377 = vmatprep.mubr.bf16.mxu0 0
      %1378 = vmatmul.mubr.bf16.gmra.mrb[0].mxu0 %v552
      %v1379 = vpop.f32.mrb[0].mxu0
      %v1380 = vadd.f32 %v450, %v1379
      %v1381 = vpop.f32.mrb[0].mxu0
      %v1382 = vpop.f32.mrb[0].mxu0
      %v1383 = vadd.f32 %v455, %v1382
      %v1384 = vpop.f32.mrb[0].mxu0
      %1385 = vmatprep.mubr.bf16.mxu0 0
      %1386 = vmatmul.mubr.bf16.gmra.mrb[0].mxu0 %v555
      %v1387 = vpop.f32.mrb[0].mxu0
      %v1388 = vadd.f32 %v460, %v1387
      %v1389 = vpop.f32.mrb[0].mxu0
      %v1390 = vpop.f32.mrb[0].mxu0
      %v1391 = vadd.f32 %v465, %v1390
      %v1392 = vpop.f32.mrb[0].mxu0
      %1393 = vmatprep.mubr.bf16.mxu0 0
      %1394 = vmatmul.mubr.bf16.gmra.mrb[0].mxu0 %v558
      %v1395 = vpop.f32.mrb[0].mxu0
      %v1396 = vadd.f32 %v470, %v1395
      %v1397 = vpop.f32.mrb[0].mxu0
      %v1398 = vpop.f32.mrb[0].mxu0
      %v1399 = vadd.f32 %v475, %v1398
      %v1400 = vpop.f32.mrb[0].mxu0
      %1401 = vdwg.mxu0
      %v1402 = vmax.f32 %v1340, 0.0
      %v1403 = vmax.f32 %v1343, 0.0
      %v1404 = vmax.f32 %v1348, 0.0
      %v1405 = vmax.f32 %v1351, 0.0
      %v1406 = vmax.f32 %v1356, 0.0
      %v1407 = vmax.f32 %v1359, 0.0
      %v1408 = vmax.f32 %v1364, 0.0
      %v1409 = vmax.f32 %v1367, 0.0
      %v1410 = vmax.f32 %v1372, 0.0
      %v1411 = vmax.f32 %v1375, 0.0
      %v1412 = vmax.f32 %v1380, 0.0
      %v1413 = vmax.f32 %v1383, 0.0
      %v1414 = vmax.f32 %v1388, 0.0
      %v1415 = vmax.f32 %v1391, 0.0
      %v1416 = vmax.f32 %v1396, 0.0
      %v1417 = vmax.f32 %v1399, 0.0
      %v1418 = vpack.c.bf16 %v1403, %v1402
      %v1419 = vpack.c.bf16 %v1405, %v1404
      %v1420 = vpack.c.bf16 %v1407, %v1406
      %v1421 = vpack.c.bf16 %v1409, %v1408
      %v1422 = vpack.c.bf16 %v1411, %v1410
      %v1423 = vpack.c.bf16 %v1413, %v1412
      %v1424 = vpack.c.bf16 %v1415, %v1414
      %v1425 = vpack.c.bf16 %v1417, %v1416
      %1426 = vmatprep.subr.bf16.mxu0 0
      %1427 = vmatpush1.bf16.msra.mxu0 %v1418
      %1428 = vmatprep.subr.bf16.mxu0 0
      %1429 = vmatpush1.bf16.msra.mxu0 %v1419
      %1430 = vmatprep.subr.bf16.mxu0 0
      %1431 = vmatpush1.bf16.msra.mxu0 %v1420
      %1432 = vmatprep.subr.bf16.mxu0 0
      %1433 = vmatpush1.bf16.msra.mxu0 %v1421
      %1434 = vmatprep.subr.bf16.mxu0 0
      %1435 = vmatpush1.bf16.msra.mxu0 %v1422
      %1436 = vmatprep.subr.bf16.mxu0 0
      %1437 = vmatpush1.bf16.msra.mxu0 %v1423
      %1438 = vmatprep.subr.bf16.mxu0 0
      %1439 = vmatpush1.bf16.msra.mxu0 %v1424
      %1440 = vmatprep.subr.bf16.mxu0 0
      %1441 = vmatpush1.bf16.msra.mxu0 %v1425
      %1442 = vmatprep.subr.bf16.mxu0 0
      %1443 = vmatpush1.bf16.msra.mxu0 0
      %1444 = vmatprep.subr.bf16.mxu0 0
      %1445 = vmatpush1.bf16.msra.mxu0 0
      %1446 = vmatprep.subr.bf16.mxu0 0
      %1447 = vmatpush1.bf16.msra.mxu0 0
      %1448 = vmatprep.subr.bf16.mxu0 0
      %1449 = vmatpush1.bf16.msra.mxu0 0
      %1450 = vmatprep.subr.bf16.mxu0 0
      %1451 = vmatpush1.bf16.msra.mxu0 0
      %1452 = vmatprep.subr.bf16.mxu0 0
      %1453 = vmatpush1.bf16.msra.mxu0 0
      %1454 = vmatprep.subr.bf16.mxu0 0
      %1455 = vmatpush1.bf16.msra.mxu0 0
      %1456 = vmatprep.subr.bf16.mxu0 0
      %1457 = vmatpush1.bf16.msra.mxu0 0
      %1458 = vmatprep.mubr.bf16.mxu0 0
      %1459 = vmatmul.mubr.bf16.gmra.mrb[0].mxu0 %v737
      %v1460 = vpop.f32.mrb[0].mxu0
      %v1461 = vadd.f32 %v684, %v1460
      %v1462 = vpop.f32.mrb[0].mxu0
      %v1463 = vpop.f32.mrb[0].mxu0
      %v1464 = vadd.f32 %v689, %v1463
      %v1465 = vpop.f32.mrb[0].mxu0
      %1466 = vmatprep.mubr.bf16.mxu0 0
      %1467 = vmatmul.mubr.bf16.gmra.mrb[0].mxu0 %v738
      %v1468 = vpop.f32.mrb[0].mxu0
      %v1469 = vadd.f32 %v694, %v1468
      %v1470 = vpop.f32.mrb[0].mxu0
      %v1471 = vpop.f32.mrb[0].mxu0
      %v1472 = vadd.f32 %v699, %v1471
      %v1473 = vpop.f32.mrb[0].mxu0
      %1474 = vmatprep.mubr.bf16.mxu0 0
      %1475 = vmatmul.mubr.bf16.gmra.mrb[0].mxu0 %v739
      %v1476 = vpop.f32.mrb[0].mxu0
      %v1477 = vadd.f32 %v704, %v1476
      %v1478 = vpop.f32.mrb[0].mxu0
      %v1479 = vpop.f32.mrb[0].mxu0
      %v1480 = vadd.f32 %v709, %v1479
      %v1481 = vpop.f32.mrb[0].mxu0
      %1482 = vmatprep.mubr.bf16.mxu0 0
      %1483 = vmatmul.mubr.bf16.gmra.mrb[0].mxu0 %v740
      %v1484 = vpop.f32.mrb[0].mxu0
      %v1485 = vadd.f32 %v714, %v1484
      %v1486 = vpop.f32.mrb[0].mxu0
      %v1487 = vpop.f32.mrb[0].mxu0
      %v1488 = vadd.f32 %v719, %v1487
      %v1489 = vpop.f32.mrb[0].mxu0
      %1490 = vdwg.mxu0
      %v1491 = vmax.f32 %v1461, 0.0
      %v1492 = vmax.f32 %v1464, 0.0
      %v1493 = vmax.f32 %v1469, 0.0
      %v1494 = vmax.f32 %v1472, 0.0
      %v1495 = vmax.f32 %v1477, 0.0
      %v1496 = vmax.f32 %v1480, 0.0
      %v1497 = vmax.f32 %v1485, 0.0
      %v1498 = vmax.f32 %v1488, 0.0
      %v1499 = vpack.c.bf16 %v1492, %v1491
      %v1500 = vpack.c.bf16 %v1494, %v1493
      %v1501 = vpack.c.bf16 %v1496, %v1495
      %v1502 = vpack.c.bf16 %v1498, %v1497
      %1503 = vst [vmem:[#allocation2 + $0x60] sm:$0xff] %v1499
      %1504 = vst [vmem:[#allocation2 + $0x68] sm:$0xff] %v1500
      %1505 = vst [vmem:[#allocation2 + $0x70] sm:$0xff] %v1501
      %1506 = vst [vmem:[#allocation2 + $0x78] sm:$0xff] %v1502
      %v1507 = vld [vmem:[#allocation2] sm:$0xff]
      %v1508 = vld [vmem:[#allocation2 + $0x8] sm:$0xff]
      %v1509 = vld [vmem:[#allocation2 + $0x10] sm:$0xff]
      %v1510 = vld [vmem:[#allocation2 + $0x18] sm:$0xff]
      %v1511 = vld [vmem:[#allocation2 + $0x20] sm:$0xff]
      %v1512 = vld [vmem:[#allocation2 + $0x28] sm:$0xff]
      %v1513 = vld [vmem:[#allocation2 + $0x30] sm:$0xff]
      %v1514 = vld [vmem:[#allocation2 + $0x38] sm:$0xff]
      %v1515 = vld [vmem:[#allocation2 + $0x40] sm:$0xff]
      %v1516 = vld [vmem:[#allocation2 + $0x48] sm:$0xff]
      %v1517 = vld [vmem:[#allocation2 + $0x50] sm:$0xff]
      %v1518 = vld [vmem:[#allocation2 + $0x58] sm:$0xff]
      %v1519 = vld [vmem:[#allocation2 + $0x60] sm:$0xff]
      %v1520 = vld [vmem:[#allocation2 + $0x68] sm:$0xff]
      %v1521 = vld [vmem:[#allocation2 + $0x70] sm:$0xff]
      %v1522 = vld [vmem:[#allocation2 + $0x78] sm:$0xff]
      %1524 = vset.pattern.permute.xlu0 0
      %1525 = vperm.xlu0 %1524, %v375
      %v1526 = vpop.permute.xlu0 %1525
      %1529 = vset.pattern.permute.xlu0 0
      %1530 = vperm.xlu0 %1529, %v376
      %v1531 = vpop.permute.xlu0 %1530
      %1534 = vset.pattern.permute.xlu0 0
      %1535 = vperm.xlu0 %1534, %v377
      %v1536 = vpop.permute.xlu0 %1535
      %1539 = vset.pattern.permute.xlu0 0
      %1540 = vperm.xlu0 %1539, %v378
      %v1541 = vpop.permute.xlu0 %1540
      %1544 = vset.pattern.permute.xlu0 0
      %1545 = vperm.xlu0 %1544, %v379
      %v1546 = vpop.permute.xlu0 %1545
      %1549 = vset.pattern.permute.xlu0 0
      %1550 = vperm.xlu0 %1549, %v380
      %v1551 = vpop.permute.xlu0 %1550
      %1554 = vset.pattern.permute.xlu0 0
      %1555 = vperm.xlu0 %1554, %v381
      %v1556 = vpop.permute.xlu0 %1555
      %1559 = vset.pattern.permute.xlu0 0
      %1560 = vperm.xlu0 %1559, %v382
      %v1561 = vpop.permute.xlu0 %1560
      %1564 = vset.pattern.permute.xlu0 0
      %1565 = vperm.xlu0 %1564, %v383
      %v1566 = vpop.permute.xlu0 %1565
      %1569 = vset.pattern.permute.xlu0 0
      %1570 = vperm.xlu0 %1569, %v384
      %v1571 = vpop.permute.xlu0 %1570
      %1574 = vset.pattern.permute.xlu0 0
      %1575 = vperm.xlu0 %1574, %v385
      %v1576 = vpop.permute.xlu0 %1575
      %1579 = vset.pattern.permute.xlu0 0
      %1580 = vperm.xlu0 %1579, %v386
      %v1581 = vpop.permute.xlu0 %1580
      %1584 = vset.pattern.permute.xlu0 0
      %1585 = vperm.xlu0 %1584, %v387
      %v1586 = vpop.permute.xlu0 %1585
      %1589 = vset.pattern.permute.xlu0 0
      %1590 = vperm.xlu0 %1589, %v388
      %v1591 = vpop.permute.xlu0 %1590
      %1594 = vset.pattern.permute.xlu0 0
      %1595 = vperm.xlu0 %1594, %v389
      %v1596 = vpop.permute.xlu0 %1595
      %1599 = vset.pattern.permute.xlu0 0
      %1600 = vperm.xlu0 %1599, %v390
      %v1601 = vpop.permute.xlu0 %1600
      %v1619 = vunpack.c.l.b16 %v335
      %v1620 = vunpack.c.h.b16 %v335
      %v1621 = vunpack.c.l.b16 %v336
      %v1622 = vunpack.c.h.b16 %v336
      %v1623 = vunpack.c.l.b16 %v337
      %v1624 = vunpack.c.h.b16 %v337
      %v1625 = vunpack.c.l.b16 %v338
      %v1626 = vunpack.c.h.b16 %v338
      %v1627 = vunpack.c.l.b16 %v339
      %v1628 = vunpack.c.h.b16 %v339
      %v1629 = vunpack.c.l.b16 %v340
      %v1630 = vunpack.c.h.b16 %v340
      %v1631 = vunpack.c.l.b16 %v341
      %v1632 = vunpack.c.h.b16 %v341
      %v1633 = vunpack.c.l.b16 %v342
      %v1634 = vunpack.c.h.b16 %v342
      %v1635 = vunpack.c.l.b16 %v343
      %v1636 = vunpack.c.h.b16 %v343
      %v1637 = vunpack.c.l.b16 %v344
      %v1638 = vunpack.c.h.b16 %v344
      %v1639 = vunpack.c.l.b16 %v345
      %v1640 = vunpack.c.h.b16 %v345
      %v1641 = vunpack.c.l.b16 %v346
      %v1642 = vunpack.c.h.b16 %v346
      %v1643 = vunpack.c.l.b16 %v347
      %v1644 = vunpack.c.h.b16 %v347
      %v1645 = vunpack.c.l.b16 %v348
      %v1646 = vunpack.c.h.b16 %v348
      %v1647 = vunpack.c.l.b16 %v349
      %v1648 = vunpack.c.h.b16 %v349
      %v1649 = vunpack.c.l.b16 %v350
      %v1650 = vunpack.c.h.b16 %v350
      %v1651 = vpack.c.b16 %v1621, %v1619
      %v1652 = vpack.c.b16 %v1622, %v1620
      %v1653 = vpack.c.b16 %v1625, %v1623
      %v1654 = vpack.c.b16 %v1626, %v1624
      %v1655 = vpack.c.b16 %v1629, %v1627
      %v1656 = vpack.c.b16 %v1630, %v1628
      %v1657 = vpack.c.b16 %v1633, %v1631
      %v1658 = vpack.c.b16 %v1634, %v1632
      %v1659 = vpack.c.b16 %v1637, %v1635
      %v1660 = vpack.c.b16 %v1638, %v1636
      %v1661 = vpack.c.b16 %v1641, %v1639
      %v1662 = vpack.c.b16 %v1642, %v1640
      %v1663 = vpack.c.b16 %v1645, %v1643
      %v1664 = vpack.c.b16 %v1646, %v1644
      %v1665 = vpack.c.b16 %v1649, %v1647
      %v1666 = vpack.c.b16 %v1650, %v1648
      %1683 = vmatprep.subr.bf16.mxu0 0
      %1684 = vmatpush1.bf16.msra.mxu0 %v1507
      %1685 = vmatprep.subr.bf16.mxu0 0
      %1686 = vmatpush1.bf16.msra.mxu0 %v1508
      %1687 = vmatprep.subr.bf16.mxu0 0
      %1688 = vmatpush1.bf16.msra.mxu0 %v1509
      %1689 = vmatprep.subr.bf16.mxu0 0
      %1690 = vmatpush1.bf16.msra.mxu0 %v1510
      %1691 = vmatprep.subr.bf16.mxu0 0
      %1692 = vmatpush1.bf16.msra.mxu0 %v1511
      %1693 = vmatprep.subr.bf16.mxu0 0
      %1694 = vmatpush1.bf16.msra.mxu0 %v1512
      %1695 = vmatprep.subr.bf16.mxu0 0
      %1696 = vmatpush1.bf16.msra.mxu0 %v1513
      %1697 = vmatprep.subr.bf16.mxu0 0
      %1698 = vmatpush1.bf16.msra.mxu0 %v1514
      %1699 = vmatprep.subr.bf16.mxu0 0
      %1700 = vmatpush1.bf16.msra.mxu0 %v1515
      %1701 = vmatprep.subr.bf16.mxu0 0
      %1702 = vmatpush1.bf16.msra.mxu0 %v1516
      %1703 = vmatprep.subr.bf16.mxu0 0
      %1704 = vmatpush1.bf16.msra.mxu0 %v1517
      %1705 = vmatprep.subr.bf16.mxu0 0
      %1706 = vmatpush1.bf16.msra.mxu0 %v1518
      %1707 = vmatprep.subr.bf16.mxu0 0
      %1708 = vmatpush1.bf16.msra.mxu0 %v1519
      %1709 = vmatprep.subr.bf16.mxu0 0
      %1710 = vmatpush1.bf16.msra.mxu0 %v1520
      %1711 = vmatprep.subr.bf16.mxu0 0
      %1712 = vmatpush1.bf16.msra.mxu0 %v1521
      %1713 = vmatprep.subr.bf16.mxu0 0
      %1714 = vmatpush1.bf16.msra.mxu0 %v1522
      %1715 = vmatprep.mubr.bf16.mxu0 %v1652
      %1716 = vmatmul.mubr.bf16.gmra.mrb[0].mxu0 %v1651
      %v1717 = vpop.f32.mrb[0].mxu0
      %v1718 = vadd.f32 %v1526, %v1717
      %v1719 = vpop.f32.mrb[0].mxu0
      %v1720 = vpop.f32.mrb[0].mxu0
      %v1721 = vadd.f32 %v1531, %v1720
      %v1722 = vpop.f32.mrb[0].mxu0
      %1723 = vmatprep.mubr.bf16.mxu0 %v1654
      %1724 = vmatmul.mubr.bf16.gmra.mrb[0].mxu0 %v1653
      %v1725 = vpop.f32.mrb[0].mxu0
      %v1726 = vadd.f32 %v1536, %v1725
      %v1727 = vpop.f32.mrb[0].mxu0
      %v1728 = vpop.f32.mrb[0].mxu0
      %v1729 = vadd.f32 %v1541, %v1728
      %v1730 = vpop.f32.mrb[0].mxu0
      %1731 = vmatprep.mubr.bf16.mxu0 %v1656
      %1732 = vmatmul.mubr.bf16.gmra.mrb[0].mxu0 %v1655
      %v1733 = vpop.f32.mrb[0].mxu0
      %v1734 = vadd.f32 %v1546, %v1733
      %v1735 = vpop.f32.mrb[0].mxu0
      %v1736 = vpop.f32.mrb[0].mxu0
      %v1737 = vadd.f32 %v1551, %v1736
      %v1738 = vpop.f32.mrb[0].mxu0
      %1739 = vmatprep.mubr.bf16.mxu0 %v1658
      %1740 = vmatmul.mubr.bf16.gmra.mrb[0].mxu0 %v1657
      %v1741 = vpop.f32.mrb[0].mxu0
      %v1742 = vadd.f32 %v1556, %v1741
      %v1743 = vpop.f32.mrb[0].mxu0
      %v1744 = vpop.f32.mrb[0].mxu0
      %v1745 = vadd.f32 %v1561, %v1744
      %v1746 = vpop.f32.mrb[0].mxu0
      %1747 = vmatprep.mubr.bf16.mxu0 %v1660
      %1748 = vmatmul.mubr.bf16.gmra.mrb[0].mxu0 %v1659
      %v1749 = vpop.f32.mrb[0].mxu0
      %v1750 = vadd.f32 %v1566, %v1749
      %v1751 = vpop.f32.mrb[0].mxu0
      %v1752 = vpop.f32.mrb[0].mxu0
      %v1753 = vadd.f32 %v1571, %v1752
      %v1754 = vpop.f32.mrb[0].mxu0
      %1755 = vmatprep.mubr.bf16.mxu0 %v1662
      %1756 = vmatmul.mubr.bf16.gmra.mrb[0].mxu0 %v1661
      %v1757 = vpop.f32.mrb[0].mxu0
      %v1758 = vadd.f32 %v1576, %v1757
      %v1759 = vpop.f32.mrb[0].mxu0
      %v1760 = vpop.f32.mrb[0].mxu0
      %v1761 = vadd.f32 %v1581, %v1760
      %v1762 = vpop.f32.mrb[0].mxu0
      %1763 = vmatprep.mubr.bf16.mxu0 %v1664
      %1764 = vmatmul.mubr.bf16.gmra.mrb[0].mxu0 %v1663
      %v1765 = vpop.f32.mrb[0].mxu0
      %v1766 = vadd.f32 %v1586, %v1765
      %v1767 = vpop.f32.mrb[0].mxu0
      %v1768 = vpop.f32.mrb[0].mxu0
      %v1769 = vadd.f32 %v1591, %v1768
      %v1770 = vpop.f32.mrb[0].mxu0
      %1771 = vmatprep.mubr.bf16.mxu0 %v1666
      %1772 = vmatmul.mubr.bf16.gmra.mrb[0].mxu0 %v1665
      %v1773 = vpop.f32.mrb[0].mxu0
      %v1774 = vadd.f32 %v1596, %v1773
      %v1775 = vpop.f32.mrb[0].mxu0
      %v1776 = vpop.f32.mrb[0].mxu0
      %v1777 = vadd.f32 %v1601, %v1776
      %v1778 = vpop.f32.mrb[0].mxu0
      %1779 = vdwg.mxu0
      %v1780 = vmax.f32 %v1718, 0.0
      %v1781 = vmax.f32 %v1721, 0.0
      %v1782 = vmax.f32 %v1726, 0.0
      %v1783 = vmax.f32 %v1729, 0.0
      %v1784 = vmax.f32 %v1734, 0.0
      %v1785 = vmax.f32 %v1737, 0.0
      %v1786 = vmax.f32 %v1742, 0.0
      %v1787 = vmax.f32 %v1745, 0.0
      %v1788 = vmax.f32 %v1750, 0.0
      %v1789 = vmax.f32 %v1753, 0.0
      %v1790 = vmax.f32 %v1758, 0.0
      %v1791 = vmax.f32 %v1761, 0.0
      %v1792 = vmax.f32 %v1766, 0.0
      %v1793 = vmax.f32 %v1769, 0.0
      %v1794 = vmax.f32 %v1774, 0.0
      %v1795 = vmax.f32 %v1777, 0.0
      %1796 = vst [vmem:[%s309] sm:$0xff] %v1780
      %1797 = vst [vmem:[%s309 + $0x8] sm:$0xff] %v1781
      %1798 = vst [vmem:[%s309 + $0x10] sm:$0xff] %v1782
      %1799 = vst [vmem:[%s309 + $0x18] sm:$0xff] %v1783
      %1800 = vst [vmem:[%s309 + $0x20] sm:$0xff] %v1784
      %1801 = vst [vmem:[%s309 + $0x28] sm:$0xff] %v1785
      %1802 = vst [vmem:[%s309 + $0x30] sm:$0xff] %v1786
      %1803 = vst [vmem:[%s309 + $0x38] sm:$0xff] %v1787
      %1804 = vst [vmem:[%s309 + $0x40] sm:$0xff] %v1788
      %1805 = vst [vmem:[%s309 + $0x48] sm:$0xff] %v1789
      %1806 = vst [vmem:[%s309 + $0x50] sm:$0xff] %v1790
      %1807 = vst [vmem:[%s309 + $0x58] sm:$0xff] %v1791
      %1808 = vst [vmem:[%s309 + $0x60] sm:$0xff] %v1792
      %1809 = vst [vmem:[%s309 + $0x68] sm:$0xff] %v1793
      %1810 = vst [vmem:[%s309 + $0x70] sm:$0xff] %v1794
      %1811 = vst [vmem:[%s309 + $0x78] sm:$0xff] %v1795
      %p1812 = scmp.lt.s32.totalorder %s22, 1
      %s1813 = scalar_select %p1812, %s22, 1
      %p1814 = scmp.lt.s32.totalorder %s23, 0
      %s1815 = scalar_select %p1814, %s23, 0
      %s1816 = smul.addr %s1813, 16
      %s1817 = sadd.s32 %s1815, %s1816
      %s1818 = smul.addr %s1817, 8
      %s1819 = scalar_lea.vmem %s7, %s1818
      // Predicated region
      $region49: #{vhrdownnet5_forward.1} parent=47 // pred_check
        %p1820 = pneg %p204
      $region50: #{vhrdownnet5_forward.1} parent=47 // pred_check_branch
        %1822 = sbr.rel (%p1820) target = $region52
      $region51: #{vhrdownnet5_forward.1} parent=47 // pred_region
        _
      $region52: #{vhrdownnet5_forward.1} parent=47 // pred_fallthru
        _
    $region48: #{vhrdownnet5_forward.1} parent=5 // pred_fallthru
      _
    %p1823 = scmp.le.s32.totalorder 2, %s13
    // Predicated region
    $region53: #{vhrdownnet5_forward.1} parent=5 // pred_check
      %p1824 = pneg %p1823
    $region54: #{vhrdownnet5_forward.1} parent=5 // pred_check_branch
      %1826 = sbr.rel (%p1824) target = $region56
    $region55: #{vhrdownnet5_forward.1} parent=5 // pred_region
      %s1827 = ssub.s32 %s13, 2
      // Predicated region
      $region57: #{vhrdownnet5_forward.1} parent=55 // pred_check
        %p1828 = pneg %p210
      $region58: #{vhrdownnet5_forward.1} parent=55 // pred_check_branch
        %1830 = sbr.rel (%p1828) target = $region60
      $region59: #{vhrdownnet5_forward.1} parent=55 // pred_region
        %p1831 = scmp.lt.s32.totalorder %s24, 1
        %s1832 = scalar_select %p1831, %s24, 1
        %p1833 = scmp.lt.s32.totalorder %s25, 0
        %s1834 = scalar_select %p1833, %s25, 0
        %s1835 = smul.addr %s1832, 16
        %s1836 = sadd.s32 %s1834, %s1835
        %s1837 = smul.addr %s1836, 8
        %s1838 = scalar_lea.vmem %s7, %s1837
      $region60: #{vhrdownnet5_forward.1} parent=55 // pred_fallthru
        _
    $region56: #{vhrdownnet5_forward.1} parent=5 // pred_fallthru
      _
  $region6: #{vhrdownnet5_forward.1} parent=0 // loop_footer
    %s17 = sadd.s32 1, %s13
  $region7: #{vhrdownnet5_forward.1} parent=0 // loop_footer_branch
    %12 = sbr.rel target = $region3
  $region8: #{vhrdownnet5_forward.1} parent=0 // loop_exit
    _

</llo_original>
